<compile_context>
chip_gen: v7x
topology: tpu7x:2x2x1
jax: 0.10.0
libtpu: 0.0.40
codegen_flags: <defaults>
</compile_context>

<pallas_src>
import functools

import numpy as np
import jax
import jax.numpy as jnp
from jax.experimental import pallas as pl
from jax.experimental.pallas import tpu as pltpu

EPS = 1e-5          # PyTorch InstanceNorm default eps
NEG_SLOPE = 0.01    # F.leaky_relu default negative_slope (== leakiness default)

# 3x3 tap offsets, row-major (dy outer, dx inner) -> k = (dy+1)*3 + (dx+1)
OFFSETS = tuple((dy, dx) for dy in (-1, 0, 1) for dx in (-1, 0, 1))


def _round_up(n, m):
    return -(-n // m) * m


# ---------------------------------------------------------------------------
# Fused Pallas kernel: one grid step == B samples (lanes = B*P pixels)
# ---------------------------------------------------------------------------
def _fused_decoding_kernel(H, W, B, Cin, Cout, w_offs,
                           x_ref, mask_ref, w_ref, p_ref, o_ref):
    P = H * W
    L = B * P
    inv_p = 1.0 / float(P)

    # Per-channel affine / bias columns from the packed (Cmax, 9) slab.
    g0, b0 = p_ref[:Cin, 0:1], p_ref[:Cin, 1:2]
    g1, b1 = p_ref[:Cout, 2:3], p_ref[:Cout, 3:4]
    g2, b2 = p_ref[:Cout, 4:5], p_ref[:Cout, 5:6]
    bc0, bc1, bc2 = p_ref[:Cout, 6:7], p_ref[:Cout, 7:8], p_ref[:Cout, 8:9]

    def instnorm_lrelu(x, g, b):
        # Two-pass per-(sample, channel) stats.  Each sample's pixels occupy a
        # static lane segment [s*P, (s+1)*P); with P a multiple of 128 the
        # slices and the concat below are vreg-aligned (no data movement).
        segs = []
        for s in range(B):
            xs = x[:, s * P:(s + 1) * P]
            mean = jnp.sum(xs, axis=1, keepdims=True) * inv_p
            d = xs - mean
            var = jnp.sum(d * d, axis=1, keepdims=True) * inv_p   # biased (PyTorch)
            y = d * jax.lax.rsqrt(var + EPS) * g + b
            segs.append(jnp.where(y >= 0.0, y, NEG_SLOPE * y))
        return segs[0] if B == 1 else jnp.concatenate(segs, axis=1)

    def conv3x3(x, w, bias):
        # 3x3 conv as ONE MXU matmul: stack the 9 shifted (zero-masked) copies
        # of x on sublanes -> (9*C, L), contract against the packed (Cout, 9*C)
        # weights.  pltpu.roll runs on the XLU slot; masks are pre-broadcast
        # host-side so there is no per-tap sublane broadcast.
        C = x.shape[0]
        taps = []
        for k, (dy, dx) in enumerate(OFFSETS):
            s = dy * W + dx
            if s == 0:
                taps.append(x)                           # center tap: no shift/mask
            else:
                # roll semantics: out[:, i] = x[:, (i + s) mod L].  Pixels whose
                # source falls outside their own image are zeroed by the mask,
                # which also kills any cross-sample wrap-around on the shared
                # lane axis.
                xs = pltpu.roll(x, shift=(-s) % L, axis=1)
                taps.append(xs * mask_ref[k, :C, :])
        stacked = jnp.concatenate(taps, axis=0)          # (9*C, L)
        return jnp.dot(w, stacked, preferred_element_type=jnp.float32) + bias

    x = x_ref[...]                                                 # (Cin, L)
    h = instnorm_lrelu(x, g0, b0)                                  # lrelu(in_0(cat))
    h = conv3x3(h, w_ref[:, w_offs[0]:w_offs[0] + 9 * Cin], bc0)   # conv0
    skip = h                                                       # residual
    h = instnorm_lrelu(h, g1, b1)                                  # lrelu(in_1(.))
    h = conv3x3(h, w_ref[:, w_offs[1]:w_offs[1] + 9 * Cout], bc1)  # conv1
    h = instnorm_lrelu(h, g2, b2)                                  # lrelu(in_2(.))
    h = conv3x3(h, w_ref[:, w_offs[2]:w_offs[2] + 9 * Cout], bc2) + skip
    o_ref[...] = h                                                 # lane-dense store


# ---------------------------------------------------------------------------
# Host-side helpers
# ---------------------------------------------------------------------------
def _make_boundary_masks(H, W, B, Cmax):
    """(9, Cmax, B*P) f32: 1.0 where the (dy,dx)-shifted source pixel exists.

    Pre-broadcast over channels (sublanes) and tiled over the B samples that
    share the lane axis, so the kernel never re-broadcasts mask rows."""
    P = H * W
    hh = np.arange(P) // W
    ww = np.arange(P) % W
    m = np.zeros((9, P), np.float32)
    for k, (dy, dx) in enumerate(OFFSETS):
        valid = (hh + dy >= 0) & (hh + dy < H) & (ww + dx >= 0) & (ww + dx < W)
        m[k] = valid.astype(np.float32)
    m = np.tile(m, (1, B))                                          # (9, B*P)
    m = np.broadcast_to(m[:, None, :], (9, Cmax, B * P))
    return jnp.asarray(np.ascontiguousarray(m))


def _pack_conv_weight(w):
    """(Cout, Cin, 3, 3) -> (Cout, 9*Cin); column = (ky*3+kx)*Cin + cin,
    matching the tap-major / channel-minor row order of the stacked operand."""
    cout, cin = w.shape[0], w.shape[1]
    return jnp.transpose(w, (0, 2, 3, 1)).reshape(cout, 9 * cin)


def _choose_samples_per_block(N, Cin, P):
    """Samples batched onto the lane axis of each grid step.

    Targets: (a) keep >= 2 grid steps when N allows it so both v7x TensorCores
    get work; (b) batch everything else onto lanes to amortize per-step
    overhead; (c) keep the largest in-kernel intermediate (the (9*Cin, B*P)
    f32 stacked conv operand) around <= 4 MiB; (d) 128-aligned lane blocks."""
    if N <= 1:
        return 1
    b = N // 2 if N % 2 == 0 else 1
    cap = max(1, (4 << 20) // (9 * Cin * P * 4))
    while b > cap and b % 2 == 0:
        b //= 2
    if (b * P) % 128 != 0:          # BlockSpec needs 128-aligned lane blocks
        b = N                       # fall back to one full-array block
    return b


def decoding_module_forward(params, x1, x2):
    """x1, x2: NCHW float32; returns NCHW float32 with output_channels."""
    N, c1, H, W = x1.shape
    c2 = x2.shape[1]
    Cin, Cout = c1 + c2, params["w0"].shape[0]
    P = H * W
    Cmax = max(Cin, Cout)

    B = _choose_samples_per_block(N, Cin, P)
    G = N // B
    L = B * P

    # Activations: channels on sublanes, sample-major flattened pixels on lanes.
    x = jnp.concatenate([x1, x2], axis=1)                      # (N, Cin, H, W)
    x = jnp.transpose(x, (1, 0, 2, 3)).reshape(Cin, N * P)     # (Cin, N*P)

    masks = _make_boundary_masks(H, W, B, Cmax)                # (9, Cmax, L)

    # One packed weight slab; each conv's (Cout, 9*C) section starts at a
    # 128-aligned lane offset so in-kernel slices need no lane rotation.
    off0 = 0
    off1 = _round_up(9 * Cin, 128)
    off2 = off1 + _round_up(9 * Cout, 128)
    wtot = off2 + _round_up(9 * Cout, 128)
    w_slab = jnp.zeros((Cout, wtot), jnp.float32)
    w_slab = w_slab.at[:, off0:off0 + 9 * Cin].set(_pack_conv_weight(params["w0"]))
    w_slab = w_slab.at[:, off1:off1 + 9 * Cout].set(_pack_conv_weight(params["w1"]))
    w_slab = w_slab.at[:, off2:off2 + 9 * Cout].set(_pack_conv_weight(params["w2"]))

    # All per-channel vectors (IN affine + conv biases) in one (Cmax, 9) slab.
    p_slab = jnp.zeros((Cmax, 9), jnp.float32)
    for j, (name, c) in enumerate([("g0", Cin), ("b0", Cin), ("g1", Cout),
                                   ("b1", Cout), ("g2", Cout), ("b2", Cout),
                                   ("bc0", Cout), ("bc1", Cout), ("bc2", Cout)]):
        p_slab = p_slab.at[:c, j].set(params[name])

    kernel = functools.partial(_fused_decoding_kernel, H, W, B, Cin, Cout,
                               (off0, off1, off2))

    out = pl.pallas_call(
        kernel,
        out_shape=jax.ShapeDtypeStruct((Cout, N * P), jnp.float32),
        grid=(G,),
        in_specs=[
            pl.BlockSpec((Cin, L), lambda i: (0, i)),          # activations
            pl.BlockSpec((9, Cmax, L), lambda i: (0, 0, 0)),   # boundary masks
            pl.BlockSpec((Cout, wtot), lambda i: (0, 0)),      # packed weights
            pl.BlockSpec((Cmax, 9), lambda i: (0, 0)),         # affine/bias slab
        ],
        out_specs=pl.BlockSpec((Cout, L), lambda i: (0, i)),
        compiler_params=pltpu.CompilerParams(
            dimension_semantics=("parallel",),                 # v7x: both TCs
            vmem_limit_bytes=32 * 1024 * 1024,                 # safe on v7x 64 MiB
        ),
    )(x, masks, w_slab, p_slab)

    return out.reshape(Cout, N, P).transpose(1, 0, 2).reshape(N, Cout, H, W)


# ---------------------------------------------------------------------------
# Parameter init (deterministic, synthetic — mirrors nn.Module __init__ shapes)
# ---------------------------------------------------------------------------
def init_params(key, input_channels, output_channels):
    ks = jax.random.split(key, 6)
    p = {}
    p["g0"] = 1.0 + 0.1 * jax.random.normal(ks[0], (input_channels,), jnp.float32)
    p["b0"] = 0.1 * jax.random.normal(ks[1], (input_channels,), jnp.float32)
    p["g1"] = 1.0 + 0.1 * jax.random.normal(ks[2], (output_channels,), jnp.float32)
    p["b1"] = 0.1 * jax.random.normal(ks[3], (output_channels,), jnp.float32)
    p["g2"] = 1.0 + 0.1 * jax.random.normal(ks[4], (output_channels,), jnp.float32)
    p["b2"] = 0.1 * jax.random.normal(ks[5], (output_channels,), jnp.float32)

    wk = jax.random.split(jax.random.fold_in(key, 123), 6)
    p["w0"] = 0.1 * jax.random.normal(wk[0], (output_channels, input_channels, 3, 3), jnp.float32)
    p["bc0"] = 0.05 * jax.random.normal(wk[1], (output_channels,), jnp.float32)
    p["w1"] = 0.1 * jax.random.normal(wk[2], (output_channels, output_channels, 3, 3), jnp.float32)
    p["bc1"] = 0.05 * jax.random.normal(wk[3], (output_channels,), jnp.float32)
    p["w2"] = 0.1 * jax.random.normal(wk[4], (output_channels, output_channels, 3, 3), jnp.float32)
    p["bc2"] = 0.05 * jax.random.normal(wk[5], (output_channels,), jnp.float32)
    return p


# ---------------------------------------------------------------------------
# Pure-JAX reference (training-mode InstanceNorm + conv2d), for validation
# ---------------------------------------------------------------------------
def _reference_forward(params, x1, x2):
    x = jnp.concatenate([x1, x2], axis=1)

    def inorm_lrelu(x, g, b):
        mean = jnp.mean(x, axis=(2, 3), keepdims=True)
        var = jnp.var(x, axis=(2, 3), keepdims=True)
        y = (x - mean) * jax.lax.rsqrt(var + EPS)
        y = y * g.reshape(1, -1, 1, 1) + b.reshape(1, -1, 1, 1)
        return jnp.where(y >= 0.0, y, NEG_SLOPE * y)

    def conv(x, w, b):
        y = jax.lax.conv_general_dilated(
            x, w, window_strides=(1, 1), padding=((1, 1), (1, 1)),
            dimension_numbers=("NCHW", "OIHW", "NCHW"),
            precision=jax.lax.Precision.HIGHEST)
        return y + b.reshape(1, -1, 1, 1)

    h = inorm_lrelu(x, params["g0"], params["b0"])
    h = conv(h, params["w0"], params["bc0"])
    skip = h
    h = inorm_lrelu(h, params["g1"], params["b1"])
    h = conv(h, params["w1"], params["bc1"])
    h = inorm_lrelu(h, params["g2"], params["b2"])
    h = conv(h, params["w2"], params["bc2"]) + skip
    return h


# ---------------------------------------------------------------------------
if __name__ == "__main__":
    # N=4 -> 2 "parallel" grid steps (v7x: one per TensorCore) x 2 samples/step
    # batched onto the lane axis.
    N, H, W = 4, 16, 16
    c1, c2 = 4, 4
    input_channels = c1 + c2      # concat of x1 and x2 along channels
    output_channels = 4

    key = jax.random.PRNGKey(0)
    k1, k2, kp = jax.random.split(key, 3)
    x1 = jax.random.normal(k1, (N, c1, H, W), jnp.float32)
    x2 = jax.random.normal(k2, (N, c2, H, W), jnp.float32)
    params = init_params(kp, input_channels, output_channels)

    fwd = jax.jit(decoding_module_forward)
    out = jax.block_until_ready(fwd(params, x1, x2))

    assert out.shape == (N, output_channels, H, W), out.shape
    assert bool(jnp.all(jnp.isfinite(out)))

    # Validate against a pure-JAX reference of the PyTorch forward.
    ref = jax.block_until_ready(_reference_forward(params, x1, x2))
    max_err = float(jnp.max(jnp.abs(out - ref)))
    scale = max(1.0, float(jnp.max(jnp.abs(ref))))
    assert max_err < 1e-3 * scale, f"max abs error vs reference: {max_err}"

    print("KERNEL_OK")
</pallas_src>

<mosaic_0001>
module attributes {stable_mosaic.version = 11 : i64} {
  func.func @_fused_decoding_kernel(%arg0: i32, %arg1: memref<8x512xf32, #tpu.memory_space<vmem>>, %arg2: memref<9x8x512xf32, #tpu.memory_space<vmem>>, %arg3: memref<4x384xf32, #tpu.memory_space<vmem>>, %arg4: memref<8x9xf32, #tpu.memory_space<vmem>>, %arg5: memref<4x512xf32, #tpu.memory_space<vmem>>) attributes {dimension_semantics = [#tpu.dimension_semantics<parallel>], iteration_bounds = array<i64: 2>, scalar_prefetch = 0 : i64, scratch_operands = 0 : i64, tpu.core_type = #tpu.core_type<tc>, window_params = [{transform_indices = @transform_0, window_bounds = array<i64: 8, 512>}, {pipeline_mode = #tpu.pipeline_mode<synchronous>, transform_indices = @transform_1, window_bounds = array<i64: 9, 8, 512>}, {pipeline_mode = #tpu.pipeline_mode<synchronous>, transform_indices = @transform_2, window_bounds = array<i64: 4, 384>}, {pipeline_mode = #tpu.pipeline_mode<synchronous>, transform_indices = @transform_3, window_bounds = array<i64: 8, 9>}, {transform_indices = @transform_4, window_bounds = array<i64: 4, 512>}]} {
    %c0 = arith.constant 0 : index
    %c0_0 = arith.constant 0 : index
    %0 = vector.load %arg4[%c0, %c0_0] : memref<8x9xf32, #tpu.memory_space<vmem>>, vector<8x1xf32>
    %c0_1 = arith.constant 0 : index
    %c1 = arith.constant 1 : index
    %1 = vector.load %arg4[%c0_1, %c1] : memref<8x9xf32, #tpu.memory_space<vmem>>, vector<8x1xf32>
    %c0_2 = arith.constant 0 : index
    %c2 = arith.constant 2 : index
    %2 = vector.load %arg4[%c0_2, %c2] : memref<8x9xf32, #tpu.memory_space<vmem>>, vector<4x1xf32>
    %c0_3 = arith.constant 0 : index
    %c3 = arith.constant 3 : index
    %3 = vector.load %arg4[%c0_3, %c3] : memref<8x9xf32, #tpu.memory_space<vmem>>, vector<4x1xf32>
    %c0_4 = arith.constant 0 : index
    %c4 = arith.constant 4 : index
    %4 = vector.load %arg4[%c0_4, %c4] : memref<8x9xf32, #tpu.memory_space<vmem>>, vector<4x1xf32>
    %c0_5 = arith.constant 0 : index
    %c5 = arith.constant 5 : index
    %5 = vector.load %arg4[%c0_5, %c5] : memref<8x9xf32, #tpu.memory_space<vmem>>, vector<4x1xf32>
    %c0_6 = arith.constant 0 : index
    %c6 = arith.constant 6 : index
    %6 = vector.load %arg4[%c0_6, %c6] : memref<8x9xf32, #tpu.memory_space<vmem>>, vector<4x1xf32>
    %c0_7 = arith.constant 0 : index
    %c7 = arith.constant 7 : index
    %7 = vector.load %arg4[%c0_7, %c7] : memref<8x9xf32, #tpu.memory_space<vmem>>, vector<4x1xf32>
    %c0_8 = arith.constant 0 : index
    %c8 = arith.constant 8 : index
    %8 = vector.load %arg4[%c0_8, %c8] : memref<8x9xf32, #tpu.memory_space<vmem>>, vector<4x1xf32>
    %c0_9 = arith.constant 0 : index
    %c0_10 = arith.constant 0 : index
    %9 = vector.load %arg1[%c0_9, %c0_10] : memref<8x512xf32, #tpu.memory_space<vmem>>, vector<8x512xf32>
    %10 = vector.extract_strided_slice %9 {offsets = [0, 0], sizes = [8, 256], strides = [1, 1]} : vector<8x512xf32> to vector<8x256xf32>
    %cst = arith.constant dense<0.000000e+00> : vector<8xf32>
    %11 = vector.multi_reduction <add>, %10, %cst [1] : vector<8x256xf32> to vector<8xf32>
    %12 = vector.shape_cast %11 : vector<8xf32> to vector<8x1xf32>
    %cst_11 = arith.constant 3.906250e-03 : f32
    %13 = vector.broadcast %cst_11 : f32 to vector<8x1xf32>
    %14 = arith.mulf %12, %13 : vector<8x1xf32>
    %15 = vector.broadcast %14 : vector<8x1xf32> to vector<8x256xf32>
    %16 = arith.subf %10, %15 : vector<8x256xf32>
    %17 = arith.mulf %16, %16 : vector<8x256xf32>
    %cst_12 = arith.constant dense<0.000000e+00> : vector<8xf32>
    %18 = vector.multi_reduction <add>, %17, %cst_12 [1] : vector<8x256xf32> to vector<8xf32>
    %19 = vector.shape_cast %18 : vector<8xf32> to vector<8x1xf32>
    %cst_13 = arith.constant 3.906250e-03 : f32
    %20 = vector.broadcast %cst_13 : f32 to vector<8x1xf32>
    %21 = arith.mulf %19, %20 : vector<8x1xf32>
    %cst_14 = arith.constant 9.99999974E-6 : f32
    %22 = vector.broadcast %cst_14 : f32 to vector<8x1xf32>
    %23 = arith.addf %21, %22 : vector<8x1xf32>
    %24 = math.rsqrt %23 : vector<8x1xf32>
    %25 = vector.broadcast %24 : vector<8x1xf32> to vector<8x256xf32>
    %26 = arith.mulf %16, %25 : vector<8x256xf32>
    %27 = vector.broadcast %0 : vector<8x1xf32> to vector<8x256xf32>
    %28 = arith.mulf %26, %27 : vector<8x256xf32>
    %29 = vector.broadcast %1 : vector<8x1xf32> to vector<8x256xf32>
    %30 = arith.addf %28, %29 : vector<8x256xf32>
    %cst_15 = arith.constant 0.000000e+00 : f32
    %31 = vector.broadcast %cst_15 : f32 to vector<8x256xf32>
    %32 = arith.cmpf oge, %30, %31 : vector<8x256xf32>
    %cst_16 = arith.constant 0.00999999977 : f32
    %33 = vector.broadcast %cst_16 : f32 to vector<8x256xf32>
    %34 = arith.mulf %33, %30 : vector<8x256xf32>
    %35 = arith.select %32, %30, %34 : vector<8x256xi1>, vector<8x256xf32>
    %36 = vector.extract_strided_slice %9 {offsets = [0, 256], sizes = [8, 256], strides = [1, 1]} : vector<8x512xf32> to vector<8x256xf32>
    %cst_17 = arith.constant dense<0.000000e+00> : vector<8xf32>
    %37 = vector.multi_reduction <add>, %36, %cst_17 [1] : vector<8x256xf32> to vector<8xf32>
    %38 = vector.shape_cast %37 : vector<8xf32> to vector<8x1xf32>
    %cst_18 = arith.constant 3.906250e-03 : f32
    %39 = vector.broadcast %cst_18 : f32 to vector<8x1xf32>
    %40 = arith.mulf %38, %39 : vector<8x1xf32>
    %41 = vector.broadcast %40 : vector<8x1xf32> to vector<8x256xf32>
    %42 = arith.subf %36, %41 : vector<8x256xf32>
    %43 = arith.mulf %42, %42 : vector<8x256xf32>
    %cst_19 = arith.constant dense<0.000000e+00> : vector<8xf32>
    %44 = vector.multi_reduction <add>, %43, %cst_19 [1] : vector<8x256xf32> to vector<8xf32>
    %45 = vector.shape_cast %44 : vector<8xf32> to vector<8x1xf32>
    %cst_20 = arith.constant 3.906250e-03 : f32
    %46 = vector.broadcast %cst_20 : f32 to vector<8x1xf32>
    %47 = arith.mulf %45, %46 : vector<8x1xf32>
    %cst_21 = arith.constant 9.99999974E-6 : f32
    %48 = vector.broadcast %cst_21 : f32 to vector<8x1xf32>
    %49 = arith.addf %47, %48 : vector<8x1xf32>
    %50 = math.rsqrt %49 : vector<8x1xf32>
    %51 = vector.broadcast %50 : vector<8x1xf32> to vector<8x256xf32>
    %52 = arith.mulf %42, %51 : vector<8x256xf32>
    %53 = vector.broadcast %0 : vector<8x1xf32> to vector<8x256xf32>
    %54 = arith.mulf %52, %53 : vector<8x256xf32>
    %55 = vector.broadcast %1 : vector<8x1xf32> to vector<8x256xf32>
    %56 = arith.addf %54, %55 : vector<8x256xf32>
    %cst_22 = arith.constant 0.000000e+00 : f32
    %57 = vector.broadcast %cst_22 : f32 to vector<8x256xf32>
    %58 = arith.cmpf oge, %56, %57 : vector<8x256xf32>
    %cst_23 = arith.constant 0.00999999977 : f32
    %59 = vector.broadcast %cst_23 : f32 to vector<8x256xf32>
    %60 = arith.mulf %59, %56 : vector<8x256xf32>
    %61 = arith.select %58, %56, %60 : vector<8x256xi1>, vector<8x256xf32>
    %62 = tpu.concatenate %35, %61 in 1 : vector<8x256xf32>, vector<8x256xf32> -> vector<8x512xf32>
    %c0_24 = arith.constant 0 : index
    %c0_25 = arith.constant 0 : index
    %63 = vector.load %arg3[%c0_24, %c0_25] : memref<4x384xf32, #tpu.memory_space<vmem>>, vector<4x72xf32>
    %c17_i32 = arith.constant 17 : i32
    %64 = tpu.dynamic_rotate %62 by %c17_i32 dim 1 : vector<8x512xf32>, i32 -> vector<8x512xf32>
    %c0_26 = arith.constant 0 : index
    %c0_27 = arith.constant 0 : index
    %c0_28 = arith.constant 0 : index
    %65 = vector.load %arg2[%c0_26, %c0_27, %c0_28] : memref<9x8x512xf32, #tpu.memory_space<vmem>>, vector<1x8x512xf32>
    %66 = vector.shape_cast %65 : vector<1x8x512xf32> to vector<8x512xf32>
    %67 = arith.mulf %64, %66 : vector<8x512xf32>
    %c16_i32 = arith.constant 16 : i32
    %68 = tpu.dynamic_rotate %62 by %c16_i32 dim 1 : vector<8x512xf32>, i32 -> vector<8x512xf32>
    %c1_29 = arith.constant 1 : index
    %c0_30 = arith.constant 0 : index
    %c0_31 = arith.constant 0 : index
    %69 = vector.load %arg2[%c1_29, %c0_30, %c0_31] : memref<9x8x512xf32, #tpu.memory_space<vmem>>, vector<1x8x512xf32>
    %70 = vector.shape_cast %69 : vector<1x8x512xf32> to vector<8x512xf32>
    %71 = arith.mulf %68, %70 : vector<8x512xf32>
    %c15_i32 = arith.constant 15 : i32
    %72 = tpu.dynamic_rotate %62 by %c15_i32 dim 1 : vector<8x512xf32>, i32 -> vector<8x512xf32>
    %c2_32 = arith.constant 2 : index
    %c0_33 = arith.constant 0 : index
    %c0_34 = arith.constant 0 : index
    %73 = vector.load %arg2[%c2_32, %c0_33, %c0_34] : memref<9x8x512xf32, #tpu.memory_space<vmem>>, vector<1x8x512xf32>
    %74 = vector.shape_cast %73 : vector<1x8x512xf32> to vector<8x512xf32>
    %75 = arith.mulf %72, %74 : vector<8x512xf32>
    %c1_i32 = arith.constant 1 : i32
    %76 = tpu.dynamic_rotate %62 by %c1_i32 dim 1 : vector<8x512xf32>, i32 -> vector<8x512xf32>
    %c3_35 = arith.constant 3 : index
    %c0_36 = arith.constant 0 : index
    %c0_37 = arith.constant 0 : index
    %77 = vector.load %arg2[%c3_35, %c0_36, %c0_37] : memref<9x8x512xf32, #tpu.memory_space<vmem>>, vector<1x8x512xf32>
    %78 = vector.shape_cast %77 : vector<1x8x512xf32> to vector<8x512xf32>
    %79 = arith.mulf %76, %78 : vector<8x512xf32>
    %c511_i32 = arith.constant 511 : i32
    %80 = tpu.dynamic_rotate %62 by %c511_i32 dim 1 : vector<8x512xf32>, i32 -> vector<8x512xf32>
    %c5_38 = arith.constant 5 : index
    %c0_39 = arith.constant 0 : index
    %c0_40 = arith.constant 0 : index
    %81 = vector.load %arg2[%c5_38, %c0_39, %c0_40] : memref<9x8x512xf32, #tpu.memory_space<vmem>>, vector<1x8x512xf32>
    %82 = vector.shape_cast %81 : vector<1x8x512xf32> to vector<8x512xf32>
    %83 = arith.mulf %80, %82 : vector<8x512xf32>
    %c497_i32 = arith.constant 497 : i32
    %84 = tpu.dynamic_rotate %62 by %c497_i32 dim 1 : vector<8x512xf32>, i32 -> vector<8x512xf32>
    %c6_41 = arith.constant 6 : index
    %c0_42 = arith.constant 0 : index
    %c0_43 = arith.constant 0 : index
    %85 = vector.load %arg2[%c6_41, %c0_42, %c0_43] : memref<9x8x512xf32, #tpu.memory_space<vmem>>, vector<1x8x512xf32>
    %86 = vector.shape_cast %85 : vector<1x8x512xf32> to vector<8x512xf32>
    %87 = arith.mulf %84, %86 : vector<8x512xf32>
    %c496_i32 = arith.constant 496 : i32
    %88 = tpu.dynamic_rotate %62 by %c496_i32 dim 1 : vector<8x512xf32>, i32 -> vector<8x512xf32>
    %c7_44 = arith.constant 7 : index
    %c0_45 = arith.constant 0 : index
    %c0_46 = arith.constant 0 : index
    %89 = vector.load %arg2[%c7_44, %c0_45, %c0_46] : memref<9x8x512xf32, #tpu.memory_space<vmem>>, vector<1x8x512xf32>
    %90 = vector.shape_cast %89 : vector<1x8x512xf32> to vector<8x512xf32>
    %91 = arith.mulf %88, %90 : vector<8x512xf32>
    %c495_i32 = arith.constant 495 : i32
    %92 = tpu.dynamic_rotate %62 by %c495_i32 dim 1 : vector<8x512xf32>, i32 -> vector<8x512xf32>
    %c8_47 = arith.constant 8 : index
    %c0_48 = arith.constant 0 : index
    %c0_49 = arith.constant 0 : index
    %93 = vector.load %arg2[%c8_47, %c0_48, %c0_49] : memref<9x8x512xf32, #tpu.memory_space<vmem>>, vector<1x8x512xf32>
    %94 = vector.shape_cast %93 : vector<1x8x512xf32> to vector<8x512xf32>
    %95 = arith.mulf %92, %94 : vector<8x512xf32>
    %96 = tpu.concatenate %67, %71, %75, %79, %62, %83, %87, %91, %95 in 0 : vector<8x512xf32>, vector<8x512xf32>, vector<8x512xf32>, vector<8x512xf32>, vector<8x512xf32>, vector<8x512xf32>, vector<8x512xf32>, vector<8x512xf32>, vector<8x512xf32> -> vector<72x512xf32>
    %cst_50 = arith.constant dense<0.000000e+00> : vector<4x512xf32>
    %97 = tpu.matmul %63, %96, %cst_50 {dimension_numbers = #tpu.dot_dimension_numbers<[1], [0], [0], [1], [0, 0, 1, 1], [], []>} : vector<4x72xf32>, vector<72x512xf32>, vector<4x512xf32> -> vector<4x512xf32>
    %98 = vector.broadcast %6 : vector<4x1xf32> to vector<4x512xf32>
    %99 = arith.addf %97, %98 : vector<4x512xf32>
    %100 = vector.extract_strided_slice %99 {offsets = [0, 0], sizes = [4, 256], strides = [1, 1]} : vector<4x512xf32> to vector<4x256xf32>
    %cst_51 = arith.constant dense<0.000000e+00> : vector<4xf32>
    %101 = vector.multi_reduction <add>, %100, %cst_51 [1] : vector<4x256xf32> to vector<4xf32>
    %102 = vector.shape_cast %101 : vector<4xf32> to vector<4x1xf32>
    %cst_52 = arith.constant 3.906250e-03 : f32
    %103 = vector.broadcast %cst_52 : f32 to vector<4x1xf32>
    %104 = arith.mulf %102, %103 : vector<4x1xf32>
    %105 = vector.broadcast %104 : vector<4x1xf32> to vector<4x256xf32>
    %106 = arith.subf %100, %105 : vector<4x256xf32>
    %107 = arith.mulf %106, %106 : vector<4x256xf32>
    %cst_53 = arith.constant dense<0.000000e+00> : vector<4xf32>
    %108 = vector.multi_reduction <add>, %107, %cst_53 [1] : vector<4x256xf32> to vector<4xf32>
    %109 = vector.shape_cast %108 : vector<4xf32> to vector<4x1xf32>
    %cst_54 = arith.constant 3.906250e-03 : f32
    %110 = vector.broadcast %cst_54 : f32 to vector<4x1xf32>
    %111 = arith.mulf %109, %110 : vector<4x1xf32>
    %cst_55 = arith.constant 9.99999974E-6 : f32
    %112 = vector.broadcast %cst_55 : f32 to vector<4x1xf32>
    %113 = arith.addf %111, %112 : vector<4x1xf32>
    %114 = math.rsqrt %113 : vector<4x1xf32>
    %115 = vector.broadcast %114 : vector<4x1xf32> to vector<4x256xf32>
    %116 = arith.mulf %106, %115 : vector<4x256xf32>
    %117 = vector.broadcast %2 : vector<4x1xf32> to vector<4x256xf32>
    %118 = arith.mulf %116, %117 : vector<4x256xf32>
    %119 = vector.broadcast %3 : vector<4x1xf32> to vector<4x256xf32>
    %120 = arith.addf %118, %119 : vector<4x256xf32>
    %cst_56 = arith.constant 0.000000e+00 : f32
    %121 = vector.broadcast %cst_56 : f32 to vector<4x256xf32>
    %122 = arith.cmpf oge, %120, %121 : vector<4x256xf32>
    %cst_57 = arith.constant 0.00999999977 : f32
    %123 = vector.broadcast %cst_57 : f32 to vector<4x256xf32>
    %124 = arith.mulf %123, %120 : vector<4x256xf32>
    %125 = arith.select %122, %120, %124 : vector<4x256xi1>, vector<4x256xf32>
    %126 = vector.extract_strided_slice %99 {offsets = [0, 256], sizes = [4, 256], strides = [1, 1]} : vector<4x512xf32> to vector<4x256xf32>
    %cst_58 = arith.constant dense<0.000000e+00> : vector<4xf32>
    %127 = vector.multi_reduction <add>, %126, %cst_58 [1] : vector<4x256xf32> to vector<4xf32>
    %128 = vector.shape_cast %127 : vector<4xf32> to vector<4x1xf32>
    %cst_59 = arith.constant 3.906250e-03 : f32
    %129 = vector.broadcast %cst_59 : f32 to vector<4x1xf32>
    %130 = arith.mulf %128, %129 : vector<4x1xf32>
    %131 = vector.broadcast %130 : vector<4x1xf32> to vector<4x256xf32>
    %132 = arith.subf %126, %131 : vector<4x256xf32>
    %133 = arith.mulf %132, %132 : vector<4x256xf32>
    %cst_60 = arith.constant dense<0.000000e+00> : vector<4xf32>
    %134 = vector.multi_reduction <add>, %133, %cst_60 [1] : vector<4x256xf32> to vector<4xf32>
    %135 = vector.shape_cast %134 : vector<4xf32> to vector<4x1xf32>
    %cst_61 = arith.constant 3.906250e-03 : f32
    %136 = vector.broadcast %cst_61 : f32 to vector<4x1xf32>
    %137 = arith.mulf %135, %136 : vector<4x1xf32>
    %cst_62 = arith.constant 9.99999974E-6 : f32
    %138 = vector.broadcast %cst_62 : f32 to vector<4x1xf32>
    %139 = arith.addf %137, %138 : vector<4x1xf32>
    %140 = math.rsqrt %139 : vector<4x1xf32>
    %141 = vector.broadcast %140 : vector<4x1xf32> to vector<4x256xf32>
    %142 = arith.mulf %132, %141 : vector<4x256xf32>
    %143 = vector.broadcast %2 : vector<4x1xf32> to vector<4x256xf32>
    %144 = arith.mulf %142, %143 : vector<4x256xf32>
    %145 = vector.broadcast %3 : vector<4x1xf32> to vector<4x256xf32>
    %146 = arith.addf %144, %145 : vector<4x256xf32>
    %cst_63 = arith.constant 0.000000e+00 : f32
    %147 = vector.broadcast %cst_63 : f32 to vector<4x256xf32>
    %148 = arith.cmpf oge, %146, %147 : vector<4x256xf32>
    %cst_64 = arith.constant 0.00999999977 : f32
    %149 = vector.broadcast %cst_64 : f32 to vector<4x256xf32>
    %150 = arith.mulf %149, %146 : vector<4x256xf32>
    %151 = arith.select %148, %146, %150 : vector<4x256xi1>, vector<4x256xf32>
    %152 = tpu.concatenate %125, %151 in 1 : vector<4x256xf32>, vector<4x256xf32> -> vector<4x512xf32>
    %c0_65 = arith.constant 0 : index
    %c128 = arith.constant 128 : index
    %153 = vector.load %arg3[%c0_65, %c128] : memref<4x384xf32, #tpu.memory_space<vmem>>, vector<4x36xf32>
    %c17_i32_66 = arith.constant 17 : i32
    %154 = tpu.dynamic_rotate %152 by %c17_i32_66 dim 1 : vector<4x512xf32>, i32 -> vector<4x512xf32>
    %c0_67 = arith.constant 0 : index
    %c0_68 = arith.constant 0 : index
    %c0_69 = arith.constant 0 : index
    %155 = vector.load %arg2[%c0_67, %c0_68, %c0_69] : memref<9x8x512xf32, #tpu.memory_space<vmem>>, vector<1x4x512xf32>
    %156 = vector.shape_cast %155 : vector<1x4x512xf32> to vector<4x512xf32>
    %157 = arith.mulf %154, %156 : vector<4x512xf32>
    %c16_i32_70 = arith.constant 16 : i32
    %158 = tpu.dynamic_rotate %152 by %c16_i32_70 dim 1 : vector<4x512xf32>, i32 -> vector<4x512xf32>
    %c1_71 = arith.constant 1 : index
    %c0_72 = arith.constant 0 : index
    %c0_73 = arith.constant 0 : index
    %159 = vector.load %arg2[%c1_71, %c0_72, %c0_73] : memref<9x8x512xf32, #tpu.memory_space<vmem>>, vector<1x4x512xf32>
    %160 = vector.shape_cast %159 : vector<1x4x512xf32> to vector<4x512xf32>
    %161 = arith.mulf %158, %160 : vector<4x512xf32>
    %c15_i32_74 = arith.constant 15 : i32
    %162 = tpu.dynamic_rotate %152 by %c15_i32_74 dim 1 : vector<4x512xf32>, i32 -> vector<4x512xf32>
    %c2_75 = arith.constant 2 : index
    %c0_76 = arith.constant 0 : index
    %c0_77 = arith.constant 0 : index
    %163 = vector.load %arg2[%c2_75, %c0_76, %c0_77] : memref<9x8x512xf32, #tpu.memory_space<vmem>>, vector<1x4x512xf32>
    %164 = vector.shape_cast %163 : vector<1x4x512xf32> to vector<4x512xf32>
    %165 = arith.mulf %162, %164 : vector<4x512xf32>
    %c1_i32_78 = arith.constant 1 : i32
    %166 = tpu.dynamic_rotate %152 by %c1_i32_78 dim 1 : vector<4x512xf32>, i32 -> vector<4x512xf32>
    %c3_79 = arith.constant 3 : index
    %c0_80 = arith.constant 0 : index
    %c0_81 = arith.constant 0 : index
    %167 = vector.load %arg2[%c3_79, %c0_80, %c0_81] : memref<9x8x512xf32, #tpu.memory_space<vmem>>, vector<1x4x512xf32>
    %168 = vector.shape_cast %167 : vector<1x4x512xf32> to vector<4x512xf32>
    %169 = arith.mulf %166, %168 : vector<4x512xf32>
    %c511_i32_82 = arith.constant 511 : i32
    %170 = tpu.dynamic_rotate %152 by %c511_i32_82 dim 1 : vector<4x512xf32>, i32 -> vector<4x512xf32>
    %c5_83 = arith.constant 5 : index
    %c0_84 = arith.constant 0 : index
    %c0_85 = arith.constant 0 : index
    %171 = vector.load %arg2[%c5_83, %c0_84, %c0_85] : memref<9x8x512xf32, #tpu.memory_space<vmem>>, vector<1x4x512xf32>
    %172 = vector.shape_cast %171 : vector<1x4x512xf32> to vector<4x512xf32>
    %173 = arith.mulf %170, %172 : vector<4x512xf32>
    %c497_i32_86 = arith.constant 497 : i32
    %174 = tpu.dynamic_rotate %152 by %c497_i32_86 dim 1 : vector<4x512xf32>, i32 -> vector<4x512xf32>
    %c6_87 = arith.constant 6 : index
    %c0_88 = arith.constant 0 : index
    %c0_89 = arith.constant 0 : index
    %175 = vector.load %arg2[%c6_87, %c0_88, %c0_89] : memref<9x8x512xf32, #tpu.memory_space<vmem>>, vector<1x4x512xf32>
    %176 = vector.shape_cast %175 : vector<1x4x512xf32> to vector<4x512xf32>
    %177 = arith.mulf %174, %176 : vector<4x512xf32>
    %c496_i32_90 = arith.constant 496 : i32
    %178 = tpu.dynamic_rotate %152 by %c496_i32_90 dim 1 : vector<4x512xf32>, i32 -> vector<4x512xf32>
    %c7_91 = arith.constant 7 : index
    %c0_92 = arith.constant 0 : index
    %c0_93 = arith.constant 0 : index
    %179 = vector.load %arg2[%c7_91, %c0_92, %c0_93] : memref<9x8x512xf32, #tpu.memory_space<vmem>>, vector<1x4x512xf32>
    %180 = vector.shape_cast %179 : vector<1x4x512xf32> to vector<4x512xf32>
    %181 = arith.mulf %178, %180 : vector<4x512xf32>
    %c495_i32_94 = arith.constant 495 : i32
    %182 = tpu.dynamic_rotate %152 by %c495_i32_94 dim 1 : vector<4x512xf32>, i32 -> vector<4x512xf32>
    %c8_95 = arith.constant 8 : index
    %c0_96 = arith.constant 0 : index
    %c0_97 = arith.constant 0 : index
    %183 = vector.load %arg2[%c8_95, %c0_96, %c0_97] : memref<9x8x512xf32, #tpu.memory_space<vmem>>, vector<1x4x512xf32>
    %184 = vector.shape_cast %183 : vector<1x4x512xf32> to vector<4x512xf32>
    %185 = arith.mulf %182, %184 : vector<4x512xf32>
    %186 = tpu.concatenate %157, %161, %165, %169, %152, %173, %177, %181, %185 in 0 : vector<4x512xf32>, vector<4x512xf32>, vector<4x512xf32>, vector<4x512xf32>, vector<4x512xf32>, vector<4x512xf32>, vector<4x512xf32>, vector<4x512xf32>, vector<4x512xf32> -> vector<36x512xf32>
    %cst_98 = arith.constant dense<0.000000e+00> : vector<4x512xf32>
    %187 = tpu.matmul %153, %186, %cst_98 {dimension_numbers = #tpu.dot_dimension_numbers<[1], [0], [0], [1], [0, 0, 1, 1], [], []>} : vector<4x36xf32>, vector<36x512xf32>, vector<4x512xf32> -> vector<4x512xf32>
    %188 = vector.broadcast %7 : vector<4x1xf32> to vector<4x512xf32>
    %189 = arith.addf %187, %188 : vector<4x512xf32>
    %190 = vector.extract_strided_slice %189 {offsets = [0, 0], sizes = [4, 256], strides = [1, 1]} : vector<4x512xf32> to vector<4x256xf32>
    %cst_99 = arith.constant dense<0.000000e+00> : vector<4xf32>
    %191 = vector.multi_reduction <add>, %190, %cst_99 [1] : vector<4x256xf32> to vector<4xf32>
    %192 = vector.shape_cast %191 : vector<4xf32> to vector<4x1xf32>
    %cst_100 = arith.constant 3.906250e-03 : f32
    %193 = vector.broadcast %cst_100 : f32 to vector<4x1xf32>
    %194 = arith.mulf %192, %193 : vector<4x1xf32>
    %195 = vector.broadcast %194 : vector<4x1xf32> to vector<4x256xf32>
    %196 = arith.subf %190, %195 : vector<4x256xf32>
    %197 = arith.mulf %196, %196 : vector<4x256xf32>
    %cst_101 = arith.constant dense<0.000000e+00> : vector<4xf32>
    %198 = vector.multi_reduction <add>, %197, %cst_101 [1] : vector<4x256xf32> to vector<4xf32>
    %199 = vector.shape_cast %198 : vector<4xf32> to vector<4x1xf32>
    %cst_102 = arith.constant 3.906250e-03 : f32
    %200 = vector.broadcast %cst_102 : f32 to vector<4x1xf32>
    %201 = arith.mulf %199, %200 : vector<4x1xf32>
    %cst_103 = arith.constant 9.99999974E-6 : f32
    %202 = vector.broadcast %cst_103 : f32 to vector<4x1xf32>
    %203 = arith.addf %201, %202 : vector<4x1xf32>
    %204 = math.rsqrt %203 : vector<4x1xf32>
    %205 = vector.broadcast %204 : vector<4x1xf32> to vector<4x256xf32>
    %206 = arith.mulf %196, %205 : vector<4x256xf32>
    %207 = vector.broadcast %4 : vector<4x1xf32> to vector<4x256xf32>
    %208 = arith.mulf %206, %207 : vector<4x256xf32>
    %209 = vector.broadcast %5 : vector<4x1xf32> to vector<4x256xf32>
    %210 = arith.addf %208, %209 : vector<4x256xf32>
    %cst_104 = arith.constant 0.000000e+00 : f32
    %211 = vector.broadcast %cst_104 : f32 to vector<4x256xf32>
    %212 = arith.cmpf oge, %210, %211 : vector<4x256xf32>
    %cst_105 = arith.constant 0.00999999977 : f32
    %213 = vector.broadcast %cst_105 : f32 to vector<4x256xf32>
    %214 = arith.mulf %213, %210 : vector<4x256xf32>
    %215 = arith.select %212, %210, %214 : vector<4x256xi1>, vector<4x256xf32>
    %216 = vector.extract_strided_slice %189 {offsets = [0, 256], sizes = [4, 256], strides = [1, 1]} : vector<4x512xf32> to vector<4x256xf32>
    %cst_106 = arith.constant dense<0.000000e+00> : vector<4xf32>
    %217 = vector.multi_reduction <add>, %216, %cst_106 [1] : vector<4x256xf32> to vector<4xf32>
    %218 = vector.shape_cast %217 : vector<4xf32> to vector<4x1xf32>
    %cst_107 = arith.constant 3.906250e-03 : f32
    %219 = vector.broadcast %cst_107 : f32 to vector<4x1xf32>
    %220 = arith.mulf %218, %219 : vector<4x1xf32>
    %221 = vector.broadcast %220 : vector<4x1xf32> to vector<4x256xf32>
    %222 = arith.subf %216, %221 : vector<4x256xf32>
    %223 = arith.mulf %222, %222 : vector<4x256xf32>
    %cst_108 = arith.constant dense<0.000000e+00> : vector<4xf32>
    %224 = vector.multi_reduction <add>, %223, %cst_108 [1] : vector<4x256xf32> to vector<4xf32>
    %225 = vector.shape_cast %224 : vector<4xf32> to vector<4x1xf32>
    %cst_109 = arith.constant 3.906250e-03 : f32
    %226 = vector.broadcast %cst_109 : f32 to vector<4x1xf32>
    %227 = arith.mulf %225, %226 : vector<4x1xf32>
    %cst_110 = arith.constant 9.99999974E-6 : f32
    %228 = vector.broadcast %cst_110 : f32 to vector<4x1xf32>
    %229 = arith.addf %227, %228 : vector<4x1xf32>
    %230 = math.rsqrt %229 : vector<4x1xf32>
    %231 = vector.broadcast %230 : vector<4x1xf32> to vector<4x256xf32>
    %232 = arith.mulf %222, %231 : vector<4x256xf32>
    %233 = vector.broadcast %4 : vector<4x1xf32> to vector<4x256xf32>
    %234 = arith.mulf %232, %233 : vector<4x256xf32>
    %235 = vector.broadcast %5 : vector<4x1xf32> to vector<4x256xf32>
    %236 = arith.addf %234, %235 : vector<4x256xf32>
    %cst_111 = arith.constant 0.000000e+00 : f32
    %237 = vector.broadcast %cst_111 : f32 to vector<4x256xf32>
    %238 = arith.cmpf oge, %236, %237 : vector<4x256xf32>
    %cst_112 = arith.constant 0.00999999977 : f32
    %239 = vector.broadcast %cst_112 : f32 to vector<4x256xf32>
    %240 = arith.mulf %239, %236 : vector<4x256xf32>
    %241 = arith.select %238, %236, %240 : vector<4x256xi1>, vector<4x256xf32>
    %242 = tpu.concatenate %215, %241 in 1 : vector<4x256xf32>, vector<4x256xf32> -> vector<4x512xf32>
    %c0_113 = arith.constant 0 : index
    %c256 = arith.constant 256 : index
    %243 = vector.load %arg3[%c0_113, %c256] : memref<4x384xf32, #tpu.memory_space<vmem>>, vector<4x36xf32>
    %c17_i32_114 = arith.constant 17 : i32
    %244 = tpu.dynamic_rotate %242 by %c17_i32_114 dim 1 : vector<4x512xf32>, i32 -> vector<4x512xf32>
    %c0_115 = arith.constant 0 : index
    %c0_116 = arith.constant 0 : index
    %c0_117 = arith.constant 0 : index
    %245 = vector.load %arg2[%c0_115, %c0_116, %c0_117] : memref<9x8x512xf32, #tpu.memory_space<vmem>>, vector<1x4x512xf32>
    %246 = vector.shape_cast %245 : vector<1x4x512xf32> to vector<4x512xf32>
    %247 = arith.mulf %244, %246 : vector<4x512xf32>
    %c16_i32_118 = arith.constant 16 : i32
    %248 = tpu.dynamic_rotate %242 by %c16_i32_118 dim 1 : vector<4x512xf32>, i32 -> vector<4x512xf32>
    %c1_119 = arith.constant 1 : index
    %c0_120 = arith.constant 0 : index
    %c0_121 = arith.constant 0 : index
    %249 = vector.load %arg2[%c1_119, %c0_120, %c0_121] : memref<9x8x512xf32, #tpu.memory_space<vmem>>, vector<1x4x512xf32>
    %250 = vector.shape_cast %249 : vector<1x4x512xf32> to vector<4x512xf32>
    %251 = arith.mulf %248, %250 : vector<4x512xf32>
    %c15_i32_122 = arith.constant 15 : i32
    %252 = tpu.dynamic_rotate %242 by %c15_i32_122 dim 1 : vector<4x512xf32>, i32 -> vector<4x512xf32>
    %c2_123 = arith.constant 2 : index
    %c0_124 = arith.constant 0 : index
    %c0_125 = arith.constant 0 : index
    %253 = vector.load %arg2[%c2_123, %c0_124, %c0_125] : memref<9x8x512xf32, #tpu.memory_space<vmem>>, vector<1x4x512xf32>
    %254 = vector.shape_cast %253 : vector<1x4x512xf32> to vector<4x512xf32>
    %255 = arith.mulf %252, %254 : vector<4x512xf32>
    %c1_i32_126 = arith.constant 1 : i32
    %256 = tpu.dynamic_rotate %242 by %c1_i32_126 dim 1 : vector<4x512xf32>, i32 -> vector<4x512xf32>
    %c3_127 = arith.constant 3 : index
    %c0_128 = arith.constant 0 : index
    %c0_129 = arith.constant 0 : index
    %257 = vector.load %arg2[%c3_127, %c0_128, %c0_129] : memref<9x8x512xf32, #tpu.memory_space<vmem>>, vector<1x4x512xf32>
    %258 = vector.shape_cast %257 : vector<1x4x512xf32> to vector<4x512xf32>
    %259 = arith.mulf %256, %258 : vector<4x512xf32>
    %c511_i32_130 = arith.constant 511 : i32
    %260 = tpu.dynamic_rotate %242 by %c511_i32_130 dim 1 : vector<4x512xf32>, i32 -> vector<4x512xf32>
    %c5_131 = arith.constant 5 : index
    %c0_132 = arith.constant 0 : index
    %c0_133 = arith.constant 0 : index
    %261 = vector.load %arg2[%c5_131, %c0_132, %c0_133] : memref<9x8x512xf32, #tpu.memory_space<vmem>>, vector<1x4x512xf32>
    %262 = vector.shape_cast %261 : vector<1x4x512xf32> to vector<4x512xf32>
    %263 = arith.mulf %260, %262 : vector<4x512xf32>
    %c497_i32_134 = arith.constant 497 : i32
    %264 = tpu.dynamic_rotate %242 by %c497_i32_134 dim 1 : vector<4x512xf32>, i32 -> vector<4x512xf32>
    %c6_135 = arith.constant 6 : index
    %c0_136 = arith.constant 0 : index
    %c0_137 = arith.constant 0 : index
    %265 = vector.load %arg2[%c6_135, %c0_136, %c0_137] : memref<9x8x512xf32, #tpu.memory_space<vmem>>, vector<1x4x512xf32>
    %266 = vector.shape_cast %265 : vector<1x4x512xf32> to vector<4x512xf32>
    %267 = arith.mulf %264, %266 : vector<4x512xf32>
    %c496_i32_138 = arith.constant 496 : i32
    %268 = tpu.dynamic_rotate %242 by %c496_i32_138 dim 1 : vector<4x512xf32>, i32 -> vector<4x512xf32>
    %c7_139 = arith.constant 7 : index
    %c0_140 = arith.constant 0 : index
    %c0_141 = arith.constant 0 : index
    %269 = vector.load %arg2[%c7_139, %c0_140, %c0_141] : memref<9x8x512xf32, #tpu.memory_space<vmem>>, vector<1x4x512xf32>
    %270 = vector.shape_cast %269 : vector<1x4x512xf32> to vector<4x512xf32>
    %271 = arith.mulf %268, %270 : vector<4x512xf32>
    %c495_i32_142 = arith.constant 495 : i32
    %272 = tpu.dynamic_rotate %242 by %c495_i32_142 dim 1 : vector<4x512xf32>, i32 -> vector<4x512xf32>
    %c8_143 = arith.constant 8 : index
    %c0_144 = arith.constant 0 : index
    %c0_145 = arith.constant 0 : index
    %273 = vector.load %arg2[%c8_143, %c0_144, %c0_145] : memref<9x8x512xf32, #tpu.memory_space<vmem>>, vector<1x4x512xf32>
    %274 = vector.shape_cast %273 : vector<1x4x512xf32> to vector<4x512xf32>
    %275 = arith.mulf %272, %274 : vector<4x512xf32>
    %276 = tpu.concatenate %247, %251, %255, %259, %242, %263, %267, %271, %275 in 0 : vector<4x512xf32>, vector<4x512xf32>, vector<4x512xf32>, vector<4x512xf32>, vector<4x512xf32>, vector<4x512xf32>, vector<4x512xf32>, vector<4x512xf32>, vector<4x512xf32> -> vector<36x512xf32>
    %cst_146 = arith.constant dense<0.000000e+00> : vector<4x512xf32>
    %277 = tpu.matmul %243, %276, %cst_146 {dimension_numbers = #tpu.dot_dimension_numbers<[1], [0], [0], [1], [0, 0, 1, 1], [], []>} : vector<4x36xf32>, vector<36x512xf32>, vector<4x512xf32> -> vector<4x512xf32>
    %278 = vector.broadcast %8 : vector<4x1xf32> to vector<4x512xf32>
    %279 = arith.addf %277, %278 : vector<4x512xf32>
    %280 = arith.addf %279, %99 : vector<4x512xf32>
    %c0_147 = arith.constant 0 : index
    %c0_148 = arith.constant 0 : index
    %281 = vector.load %arg5[%c0_147, %c0_148] : memref<4x512xf32, #tpu.memory_space<vmem>>, vector<4x512xf32>
    tpu.vector_store %arg5[%c0_147, %c0_148], %280 {strides = array<i32>} : memref<4x512xf32, #tpu.memory_space<vmem>>, vector<4x512xf32>,
    return
  }
  func.func @transform_0(%arg0: i32) -> (i32, i32) {
    %c0_i32 = arith.constant 0 : i32
    %c0_i32_0 = arith.constant 0 : i32
    return %c0_i32, %arg0 : i32, i32
  }
  func.func @transform_1(%arg0: i32) -> (i32, i32, i32) {
    %c0_i32 = arith.constant 0 : i32
    %c0_i32_0 = arith.constant 0 : i32
    %c0_i32_1 = arith.constant 0 : i32
    %c0_i32_2 = arith.constant 0 : i32
    return %c0_i32, %c0_i32_0, %c0_i32_1 : i32, i32, i32
  }
  func.func @transform_2(%arg0: i32) -> (i32, i32) {
    %c0_i32 = arith.constant 0 : i32
    %c0_i32_0 = arith.constant 0 : i32
    %c0_i32_1 = arith.constant 0 : i32
    return %c0_i32, %c0_i32_0 : i32, i32
  }
  func.func @transform_3(%arg0: i32) -> (i32, i32) {
    %c0_i32 = arith.constant 0 : i32
    %c0_i32_0 = arith.constant 0 : i32
    %c0_i32_1 = arith.constant 0 : i32
    return %c0_i32, %c0_i32_0 : i32, i32
  }
  func.func @transform_4(%arg0: i32) -> (i32, i32) {
    %c0_i32 = arith.constant 0 : i32
    %c0_i32_0 = arith.constant 0 : i32
    return %c0_i32, %arg0 : i32, i32
  }
}

</mosaic_0001>

<llo_original>
// kernel: decoding_module_forward.1
$region0: #{decoding_module_forward.1}
  #allocation0 [shape = 'u32[]', space=smem, size = 0x4, offset = 0x4, fixed_abs, tag = 'smem constant byte address 0x4 - core index']
  #allocation1 [shape = 'u32[144,128]{1,0:T(1,128)}', space=vmem, size = 0x12000, scoped, tag = 'internal scratch']
  %s0 = inlined_call_operand.vmem [shape: f32[8,1024], index: 0, kind: input, shape index: {}]
  %s1 = inlined_call_operand.vmem [shape: f32[9,8,512], index: 1, kind: input, shape index: {}]
  %s2 = inlined_call_operand.vmem [shape: f32[4,384], index: 2, kind: input, shape index: {}]
  %s3 = inlined_call_operand.vmem [shape: f32[8,9], index: 3, kind: input, shape index: {}]
  %s4 = inlined_call_operand.vmem [shape: f32[4,1024], index: 4, kind: output, shape index: {}]
  %s5 = sld [smem:[#allocation0]]
  $region49: #{decoding_module_forward.1} parent=0
    _
  %s7 = ssub.s32 1, %s5
  %s8 = scalar_select 0, %s7, %s5
  loop: start=0, step=1, limit=4
  $region2: #{decoding_module_forward.1} parent=0 // loop_pre_header
    _
  $region3: #{decoding_module_forward.1} parent=0 // loop_header
    %s10 = sphi 0, %s14
    %p11 = scmp.ge.s32.totalorder %s10, 4
    %s20 = sphi 0, %s22
    %s23 = sphi 0, %s20
    %s24 = sphi 0, %s23
    %s40 = sphi 0, %s24
    %s44 = sphi 0, %s44
    %s46 = sphi 0, %s44
    %s47 = sphi 0, %s46
    %s61 = sphi 0, %s47
    %s65 = sphi 0, %s65
    %s67 = sphi 0, %s65
    %s68 = sphi 0, %s67
    %s82 = sphi 0, %s68
    %s86 = sphi 0, %s86
    %s88 = sphi 0, %s86
    %s89 = sphi 0, %s88
    %s103 = sphi 0, %s89
    %s109 = sphi 0, %s111
    %s112 = sphi 0, %s109
    %s113 = sphi 0, %s112
    %s129 = sphi 0, %s113
  $region4: #{decoding_module_forward.1} parent=0 // loop_header_branch
    %13 = sbr.rel (%p11) target = $region8
  $region5: #{decoding_module_forward.1} parent=0 // loop_body
    %s15 = ssub.s32 %s10, 1
    %s16 = ssub.s32 %s10, 2
    %s17 = sadd.s32 %s10, 1
    %s18 = ssub.s32 %s10, %s17
    %p19 = scmp.eq.s32.totalorder %s18, 0
    %s21 = sadd.s32 %s20, 1
    %s22 = scalar_select %p19, %s20, %s21
    %p25 = pneg %p19
    %p26 = scmp.eq.s32.totalorder %s10, 1
    %p27 = por %p25, %p26
    %p28 = scmp.ne.s32.totalorder %s20, %s23
    %p29 = scmp.eq.s32.totalorder %s10, 0
    %p30 = por %p28, %p29
    %p31 = scmp.ne.s32.totalorder %s20, %s23
    %p32 = scmp.eq.s32.totalorder %s15, 1
    %p33 = por %p31, %p32
    %p34 = scmp.ne.s32.totalorder %s23, %s24
    %p35 = scmp.eq.s32.totalorder %s15, 0
    %p36 = por %p34, %p35
    %p37 = scmp.ne.s32.totalorder %s23, %s24
    %p38 = scmp.eq.s32.totalorder %s16, 1
    %p39 = por %p37, %p38
    %p41 = scmp.ne.s32.totalorder %s24, %s40
    %p42 = scmp.eq.s32.totalorder %s16, 0
    %p43 = por %p41, %p42
    %s45 = sadd.s32 %s44, 1
    %p48 = scmp.eq.s32.totalorder %s10, 1
    %p49 = scmp.ne.s32.totalorder %s44, %s46
    %p50 = scmp.eq.s32.totalorder %s10, 0
    %p51 = por %p49, %p50
    %p52 = scmp.ne.s32.totalorder %s44, %s46
    %p53 = scmp.eq.s32.totalorder %s15, 1
    %p54 = por %p52, %p53
    %p55 = scmp.ne.s32.totalorder %s46, %s47
    %p56 = scmp.eq.s32.totalorder %s15, 0
    %p57 = por %p55, %p56
    %p58 = scmp.ne.s32.totalorder %s46, %s47
    %p59 = scmp.eq.s32.totalorder %s16, 1
    %p60 = por %p58, %p59
    %p62 = scmp.ne.s32.totalorder %s47, %s61
    %p63 = scmp.eq.s32.totalorder %s16, 0
    %p64 = por %p62, %p63
    %s66 = sadd.s32 %s65, 1
    %p69 = scmp.eq.s32.totalorder %s10, 1
    %p70 = scmp.ne.s32.totalorder %s65, %s67
    %p71 = scmp.eq.s32.totalorder %s10, 0
    %p72 = por %p70, %p71
    %p73 = scmp.ne.s32.totalorder %s65, %s67
    %p74 = scmp.eq.s32.totalorder %s15, 1
    %p75 = por %p73, %p74
    %p76 = scmp.ne.s32.totalorder %s67, %s68
    %p77 = scmp.eq.s32.totalorder %s15, 0
    %p78 = por %p76, %p77
    %p79 = scmp.ne.s32.totalorder %s67, %s68
    %p80 = scmp.eq.s32.totalorder %s16, 1
    %p81 = por %p79, %p80
    %p83 = scmp.ne.s32.totalorder %s68, %s82
    %p84 = scmp.eq.s32.totalorder %s16, 0
    %p85 = por %p83, %p84
    %s87 = sadd.s32 %s86, 1
    %p90 = scmp.eq.s32.totalorder %s10, 1
    %p91 = scmp.ne.s32.totalorder %s86, %s88
    %p92 = scmp.eq.s32.totalorder %s10, 0
    %p93 = por %p91, %p92
    %p94 = scmp.ne.s32.totalorder %s86, %s88
    %p95 = scmp.eq.s32.totalorder %s15, 1
    %p96 = por %p94, %p95
    %p97 = scmp.ne.s32.totalorder %s88, %s89
    %p98 = scmp.eq.s32.totalorder %s15, 0
    %p99 = por %p97, %p98
    %p100 = scmp.ne.s32.totalorder %s88, %s89
    %p101 = scmp.eq.s32.totalorder %s16, 1
    %p102 = por %p100, %p101
    %p104 = scmp.ne.s32.totalorder %s89, %s103
    %p105 = scmp.eq.s32.totalorder %s16, 0
    %p106 = por %p104, %p105
    %s107 = ssub.s32 %s10, %s17
    %p108 = scmp.eq.s32.totalorder %s107, 0
    %s110 = sadd.s32 %s109, 1
    %s111 = scalar_select %p108, %s109, %s110
    %p114 = pneg %p108
    %p115 = scmp.eq.s32.totalorder %s10, 1
    %p116 = por %p114, %p115
    %p117 = scmp.ne.s32.totalorder %s109, %s112
    %p118 = scmp.eq.s32.totalorder %s10, 0
    %p119 = por %p117, %p118
    %p120 = scmp.ne.s32.totalorder %s109, %s112
    %p121 = scmp.eq.s32.totalorder %s15, 1
    %p122 = por %p120, %p121
    %p123 = scmp.ne.s32.totalorder %s112, %s113
    %p124 = scmp.eq.s32.totalorder %s15, 0
    %p125 = por %p123, %p124
    %p126 = scmp.ne.s32.totalorder %s112, %s113
    %p127 = scmp.eq.s32.totalorder %s16, 1
    %p128 = por %p126, %p127
    %p130 = scmp.ne.s32.totalorder %s113, %s129
    %p131 = scmp.eq.s32.totalorder %s16, 0
    %p132 = por %p130, %p131
    %p133 = scmp.le.s32.totalorder 1, %s10
    %p134 = scmp.lt.s32.totalorder %s10, 3
    %p135 = pnand %p133, %p134
    %p136 = pneg %p135
    // Predicated region
    $region9: #{decoding_module_forward.1} parent=5 // pred_check
      _
    $region10: #{decoding_module_forward.1} parent=5 // pred_check_branch
      %138 = sbr.rel (%p135) target = $region12
    $region11: #{decoding_module_forward.1} parent=5 // pred_region
      %s139 = ssub.s32 %s10, 1
      // Predicated region
      $region13: #{decoding_module_forward.1} parent=11 // pred_check
        %p140 = pneg %p57
      $region14: #{decoding_module_forward.1} parent=11 // pred_check_branch
        %142 = sbr.rel (%p140) target = $region16
      $region15: #{decoding_module_forward.1} parent=11 // pred_region
        _
      $region16: #{decoding_module_forward.1} parent=11 // pred_fallthru
        _
      // Predicated region
      $region17: #{decoding_module_forward.1} parent=11 // pred_check
        %p143 = pneg %p78
      $region18: #{decoding_module_forward.1} parent=11 // pred_check_branch
        %145 = sbr.rel (%p143) target = $region20
      $region19: #{decoding_module_forward.1} parent=11 // pred_region
        _
      $region20: #{decoding_module_forward.1} parent=11 // pred_fallthru
        _
      // Predicated region
      $region21: #{decoding_module_forward.1} parent=11 // pred_check
        %p146 = pneg %p99
      $region22: #{decoding_module_forward.1} parent=11 // pred_check_branch
        %148 = sbr.rel (%p146) target = $region24
      $region23: #{decoding_module_forward.1} parent=11 // pred_region
        _
      $region24: #{decoding_module_forward.1} parent=11 // pred_fallthru
        _
    $region12: #{decoding_module_forward.1} parent=5 // pred_fallthru
      _
    %p149 = scmp.lt.s32.totalorder %s10, 2
    // Predicated region
    $region25: #{decoding_module_forward.1} parent=5 // pred_check
      %p150 = pneg %p149
    $region26: #{decoding_module_forward.1} parent=5 // pred_check_branch
      %152 = sbr.rel (%p150) target = $region28
    $region27: #{decoding_module_forward.1} parent=5 // pred_region
      // Predicated region
      $region29: #{decoding_module_forward.1} parent=27 // pred_check
        %p153 = pneg %p30
      $region30: #{decoding_module_forward.1} parent=27 // pred_check_branch
        %155 = sbr.rel (%p153) target = $region32
      $region31: #{decoding_module_forward.1} parent=27 // pred_region
        %s156 = smul.u32 4, %s10
        %p157 = scmp.lt.s32.totalorder %s156, 7
        %s158 = scalar_select %p157, %s156, 7
        %s159 = smul.addr %s158, 8
        %s160 = scalar_lea.vmem %s0, %s159
        %s161 = smul.u32 4, %s10
      $region32: #{decoding_module_forward.1} parent=27 // pred_fallthru
        _
    $region28: #{decoding_module_forward.1} parent=5 // pred_fallthru
      _
    %p162 = scmp.le.s32.totalorder 1, %s10
    %p163 = scmp.lt.s32.totalorder %s10, 3
    %p164 = pnand %p162, %p163
    %p165 = pneg %p164
    // Predicated region
    $region33: #{decoding_module_forward.1} parent=5 // pred_check
      _
    $region34: #{decoding_module_forward.1} parent=5 // pred_check_branch
      %167 = sbr.rel (%p164) target = $region36
    $region35: #{decoding_module_forward.1} parent=5 // pred_region
      %s168 = ssub.s32 %s10, 1
      %s169 = smul.u32 4, %s15
      %p170 = scmp.lt.s32.totalorder %s169, 7
      %s171 = scalar_select %p170, %s169, 7
      %s172 = smul.addr %s171, 8
      %s173 = scalar_lea.vmem %s0, %s172
      %p174 = pneg %p36
      %p175 = pneg %p33
      %p176 = pneg %p57
      %p177 = pneg %p54
      %p178 = pneg %p78
      %p179 = pneg %p75
      %p180 = pneg %p99
      %p181 = pneg %p96
      %p182 = pneg %p125
      %p183 = pneg %p122
      %s184 = smul.u32 4, %s15
      %p185 = scmp.lt.s32.totalorder %s184, 7
      %s186 = scalar_select %p185, %s184, 7
      %s187 = smul.addr %s186, 4
      %s188 = scalar_lea.vmem %s4, %s187
      %s189 = smul.u32 4, %s15
      %p190 = scmp.lt.s32.totalorder %s189, 7
      %s191 = scalar_select %p190, %s189, 7
      %s192 = smul.addr %s191, 8
      %s193 = scalar_lea.vmem %s0, %s192
      %s194 = smul.u32 4, %s15
      %s195 = smul.u32 4, %s15
      %p196 = scmp.lt.s32.totalorder %s195, 7
      %s197 = scalar_select %p196, %s195, 7
      %s198 = smul.addr %s197, 4
      %s199 = scalar_lea.vmem %s4, %s198
      %s200 = smul.u32 4, %s15
      %v201 = vld [vmem:[%s3] sm:$0xff]
      %v202 = vld [vmem:[%s3] sm:$0xf]
      %v203 = vld [vmem:[%s193] sm:$0xff]
      %v204 = vld [vmem:[%s193 + $0x8] sm:$0xff]
      %v205 = vld [vmem:[%s193 + $0x10] sm:$0xff]
      %v206 = vld [vmem:[%s193 + $0x18] sm:$0xff]
      %v207 = vadd.f32 %v203, %v204
      %208 = vadd.xlane.f32.xlu0 %v207
      %v209 = vpop.xlane.xlu0 %208
      %v210 = vmul.f32 %v209, 0.00390625
      %v211 = vsub.f32 %v203, %v210
      %v212 = vsub.f32 %v204, %v210
      %v213 = vmul.f32 %v211, %v211
      %v214 = vmul.f32 %v212, %v212
      %v215 = vadd.f32 %v213, %v214
      %216 = vadd.xlane.f32.xlu0 %v215
      %v217 = vpop.xlane.xlu0 %216
      %v218 = vmul.f32 %v217, 0.00390625
      %v219 = vadd.f32 %v218, 1e-05
      %v220 = vrsqrt.pop %v219
      %v221 = vmul.f32 %v211, %v220
      %v222 = vmul.f32 %v212, %v220
      %224 = vset.pattern.permute.xlu0 0
      %225 = vperm.xlu0 %224, %v201
      %v226 = vpop.permute.xlu0 %225
      %v228 = vmul.f32 %v221, %v226
      %v229 = vmul.f32 %v222, %v226
      %230 = vset.pattern.permute.xlu0 1
      %231 = vperm.xlu0 %230, %v201
      %v232 = vpop.permute.xlu0 %231
      %v234 = vadd.f32 %v228, %v232
      %v235 = vadd.f32 %v229, %v232
      %vm236 = vcmp.ge.f32.partialorder %v234, 0.0
      %vm237 = vcmp.ge.f32.partialorder %v235, 0.0
      %v238 = vmul.f32 %v234, 0.01
      %v239 = vmul.f32 %v235, 0.01
      %v240 = vsel %vm236, %v234, %v238
      %v241 = vsel %vm237, %v235, %v239
      %v242 = vadd.f32 %v205, %v206
      %243 = vadd.xlane.f32.xlu0 %v242
      %v244 = vpop.xlane.xlu0 %243
      %v245 = vmul.f32 %v244, 0.00390625
      %v246 = vsub.f32 %v205, %v245
      %v247 = vsub.f32 %v206, %v245
      %v248 = vmul.f32 %v246, %v246
      %v249 = vmul.f32 %v247, %v247
      %v250 = vadd.f32 %v248, %v249
      %251 = vadd.xlane.f32.xlu0 %v250
      %v252 = vpop.xlane.xlu0 %251
      %v253 = vmul.f32 %v252, 0.00390625
      %v254 = vadd.f32 %v253, 1e-05
      %v255 = vrsqrt.pop %v254
      %v256 = vmul.f32 %v246, %v255
      %v257 = vmul.f32 %v247, %v255
      %v258 = vmul.f32 %v256, %v226
      %v259 = vmul.f32 %v257, %v226
      %v260 = vadd.f32 %v258, %v232
      %v261 = vadd.f32 %v259, %v232
      %vm262 = vcmp.ge.f32.partialorder %v260, 0.0
      %vm263 = vcmp.ge.f32.partialorder %v261, 0.0
      %v264 = vmul.f32 %v260, 0.01
      %v265 = vmul.f32 %v261, 0.01
      %v266 = vsel %vm262, %v260, %v264
      %v267 = vsel %vm263, %v261, %v265
      %v268 = vld [vmem:[%s2] sm:$0xf]
      %269 = vrot.lane.b32.xlu0 %v240, 17
      %v270 = vpop.permute.xlu0 %269
      %271 = vrot.lane.b32.xlu0 %v241, 17
      %v272 = vpop.permute.xlu0 %271
      %273 = vrot.lane.b32.xlu0 %v266, 17
      %v274 = vpop.permute.xlu0 %273
      %275 = vrot.lane.b32.xlu0 %v267, 17
      %v276 = vpop.permute.xlu0 %275
      %v277 = vlaneseq
      %v278 = vand.u32 %v277, 127
      %vm279 = vcmp.lt.s32.totalorder %v278, 17
      %v280 = vsel %vm279, %v274, %v276
      %v281 = vsel %vm279, %v272, %v274
      %v282 = vsel %vm279, %v270, %v272
      %v283 = vsel %vm279, %v276, %v270
      %v284 = vld [vmem:[%s1] sm:$0xff]
      %v285 = vld [vmem:[%s1 + $0x8] sm:$0xff]
      %v286 = vld [vmem:[%s1 + $0x10] sm:$0xff]
      %v287 = vld [vmem:[%s1 + $0x18] sm:$0xff]
      %v288 = vmul.f32 %v283, %v284
      %v289 = vmul.f32 %v282, %v285
      %v290 = vmul.f32 %v281, %v286
      %v291 = vmul.f32 %v280, %v287
      %292 = vrot.lane.b32.xlu0 %v240, 16
      %v293 = vpop.permute.xlu0 %292
      %294 = vrot.lane.b32.xlu0 %v241, 16
      %v295 = vpop.permute.xlu0 %294
      %296 = vrot.lane.b32.xlu0 %v266, 16
      %v297 = vpop.permute.xlu0 %296
      %298 = vrot.lane.b32.xlu0 %v267, 16
      %v299 = vpop.permute.xlu0 %298
      %vm300 = vcmp.lt.s32.totalorder %v278, 16
      %v301 = vsel %vm300, %v297, %v299
      %v302 = vsel %vm300, %v295, %v297
      %v303 = vsel %vm300, %v293, %v295
      %v304 = vsel %vm300, %v299, %v293
      %s305 = scalar_lea.vmem %s1, 32
      %v306 = vld [vmem:[%s305] sm:$0xff]
      %v307 = vld [vmem:[%s305 + $0x8] sm:$0xff]
      %v308 = vld [vmem:[%s305 + $0x10] sm:$0xff]
      %v309 = vld [vmem:[%s305 + $0x18] sm:$0xff]
      %v310 = vmul.f32 %v304, %v306
      %v311 = vmul.f32 %v303, %v307
      %v312 = vmul.f32 %v302, %v308
      %v313 = vmul.f32 %v301, %v309
      %314 = vrot.lane.b32.xlu0 %v240, 15
      %v315 = vpop.permute.xlu0 %314
      %316 = vrot.lane.b32.xlu0 %v241, 15
      %v317 = vpop.permute.xlu0 %316
      %318 = vrot.lane.b32.xlu0 %v266, 15
      %v319 = vpop.permute.xlu0 %318
      %320 = vrot.lane.b32.xlu0 %v267, 15
      %v321 = vpop.permute.xlu0 %320
      %vm322 = vcmp.lt.s32.totalorder %v278, 15
      %v323 = vsel %vm322, %v319, %v321
      %v324 = vsel %vm322, %v317, %v319
      %v325 = vsel %vm322, %v315, %v317
      %v326 = vsel %vm322, %v321, %v315
      %s327 = scalar_lea.vmem %s1, 64
      %v328 = vld [vmem:[%s327] sm:$0xff]
      %v329 = vld [vmem:[%s327 + $0x8] sm:$0xff]
      %v330 = vld [vmem:[%s327 + $0x10] sm:$0xff]
      %v331 = vld [vmem:[%s327 + $0x18] sm:$0xff]
      %v332 = vmul.f32 %v326, %v328
      %v333 = vmul.f32 %v325, %v329
      %v334 = vmul.f32 %v324, %v330
      %v335 = vmul.f32 %v323, %v331
      %336 = vrot.lane.b32.xlu0 %v240, 1
      %v337 = vpop.permute.xlu0 %336
      %338 = vrot.lane.b32.xlu0 %v241, 1
      %v339 = vpop.permute.xlu0 %338
      %340 = vrot.lane.b32.xlu0 %v266, 1
      %v341 = vpop.permute.xlu0 %340
      %342 = vrot.lane.b32.xlu0 %v267, 1
      %v343 = vpop.permute.xlu0 %342
      %vm344 = vcmp.lt.s32.totalorder %v278, 1
      %v345 = vsel %vm344, %v341, %v343
      %v346 = vsel %vm344, %v339, %v341
      %v347 = vsel %vm344, %v337, %v339
      %v348 = vsel %vm344, %v343, %v337
      %s349 = scalar_lea.vmem %s1, 96
      %v350 = vld [vmem:[%s349] sm:$0xff]
      %v351 = vld [vmem:[%s349 + $0x8] sm:$0xff]
      %v352 = vld [vmem:[%s349 + $0x10] sm:$0xff]
      %v353 = vld [vmem:[%s349 + $0x18] sm:$0xff]
      %v354 = vmul.f32 %v348, %v350
      %v355 = vmul.f32 %v347, %v351
      %v356 = vmul.f32 %v346, %v352
      %v357 = vmul.f32 %v345, %v353
      %358 = vrot.lane.b32.xlu0 %v240, 127
      %v359 = vpop.permute.xlu0 %358
      %360 = vrot.lane.b32.xlu0 %v241, 127
      %v361 = vpop.permute.xlu0 %360
      %362 = vrot.lane.b32.xlu0 %v266, 127
      %v363 = vpop.permute.xlu0 %362
      %364 = vrot.lane.b32.xlu0 %v267, 127
      %v365 = vpop.permute.xlu0 %364
      %vm366 = vcmp.lt.s32.totalorder %v278, 127
      %v367 = vsel %vm366, %v363, %v365
      %v368 = vsel %vm366, %v361, %v363
      %v369 = vsel %vm366, %v359, %v361
      %v370 = vsel %vm366, %v365, %v359
      %s371 = scalar_lea.vmem %s1, 160
      %v372 = vld [vmem:[%s371] sm:$0xff]
      %v373 = vld [vmem:[%s371 + $0x8] sm:$0xff]
      %v374 = vld [vmem:[%s371 + $0x10] sm:$0xff]
      %v375 = vld [vmem:[%s371 + $0x18] sm:$0xff]
      %v376 = vmul.f32 %v369, %v372
      %v377 = vmul.f32 %v368, %v373
      %v378 = vmul.f32 %v367, %v374
      %v379 = vmul.f32 %v370, %v375
      %380 = vrot.lane.b32.xlu0 %v240, 113
      %v381 = vpop.permute.xlu0 %380
      %382 = vrot.lane.b32.xlu0 %v241, 113
      %v383 = vpop.permute.xlu0 %382
      %384 = vrot.lane.b32.xlu0 %v266, 113
      %v385 = vpop.permute.xlu0 %384
      %386 = vrot.lane.b32.xlu0 %v267, 113
      %v387 = vpop.permute.xlu0 %386
      %vm388 = vcmp.lt.s32.totalorder %v278, 113
      %v389 = vsel %vm388, %v385, %v387
      %v390 = vsel %vm388, %v383, %v385
      %v391 = vsel %vm388, %v381, %v383
      %v392 = vsel %vm388, %v387, %v381
      %s393 = scalar_lea.vmem %s1, 192
      %v394 = vld [vmem:[%s393] sm:$0xff]
      %v395 = vld [vmem:[%s393 + $0x8] sm:$0xff]
      %v396 = vld [vmem:[%s393 + $0x10] sm:$0xff]
      %v397 = vld [vmem:[%s393 + $0x18] sm:$0xff]
      %v398 = vmul.f32 %v391, %v394
      %v399 = vmul.f32 %v390, %v395
      %v400 = vmul.f32 %v389, %v396
      %v401 = vmul.f32 %v392, %v397
      %402 = vrot.lane.b32.xlu0 %v240, 112
      %v403 = vpop.permute.xlu0 %402
      %404 = vrot.lane.b32.xlu0 %v241, 112
      %v405 = vpop.permute.xlu0 %404
      %406 = vrot.lane.b32.xlu0 %v266, 112
      %v407 = vpop.permute.xlu0 %406
      %408 = vrot.lane.b32.xlu0 %v267, 112
      %v409 = vpop.permute.xlu0 %408
      %vm410 = vcmp.lt.s32.totalorder %v278, 112
      %v411 = vsel %vm410, %v407, %v409
      %v412 = vsel %vm410, %v405, %v407
      %v413 = vsel %vm410, %v403, %v405
      %v414 = vsel %vm410, %v409, %v403
      %s415 = scalar_lea.vmem %s1, 224
      %v416 = vld [vmem:[%s415] sm:$0xff]
      %v417 = vld [vmem:[%s415 + $0x8] sm:$0xff]
      %v418 = vld [vmem:[%s415 + $0x10] sm:$0xff]
      %v419 = vld [vmem:[%s415 + $0x18] sm:$0xff]
      %v420 = vmul.f32 %v413, %v416
      %v421 = vmul.f32 %v412, %v417
      %v422 = vmul.f32 %v411, %v418
      %v423 = vmul.f32 %v414, %v419
      %424 = vrot.lane.b32.xlu0 %v240, 111
      %v425 = vpop.permute.xlu0 %424
      %426 = vrot.lane.b32.xlu0 %v241, 111
      %v427 = vpop.permute.xlu0 %426
      %428 = vrot.lane.b32.xlu0 %v266, 111
      %v429 = vpop.permute.xlu0 %428
      %430 = vrot.lane.b32.xlu0 %v267, 111
      %v431 = vpop.permute.xlu0 %430
      %vm432 = vcmp.lt.s32.totalorder %v278, 111
      %v433 = vsel %vm432, %v429, %v431
      %v434 = vsel %vm432, %v427, %v429
      %v435 = vsel %vm432, %v425, %v427
      %v436 = vsel %vm432, %v431, %v425
      %s437 = scalar_lea.vmem %s1, 256
      %v438 = vld [vmem:[%s437] sm:$0xff]
      %v439 = vld [vmem:[%s437 + $0x8] sm:$0xff]
      %v440 = vld [vmem:[%s437 + $0x10] sm:$0xff]
      %v441 = vld [vmem:[%s437 + $0x18] sm:$0xff]
      %v442 = vmul.f32 %v435, %v438
      %v443 = vmul.f32 %v434, %v439
      %v444 = vmul.f32 %v433, %v440
      %v445 = vmul.f32 %v436, %v441
      %447 = vset.pattern.permute.xlu0 6
      %448 = vperm.xlu0 %447, %v202
      %v449 = vpop.permute.xlu0 %448
      %vm451 = vcmask 588800
      %v453 = vsel %vm451, %v268, 0
      %455 = vmatprep.subr.mxu0 %v289
      %456 = vmatpush1.msra.mxu0 %v288
      %457 = vmatprep.subr.mxu0 %v311
      %458 = vmatpush1.msra.mxu0 %v310
      %459 = vmatprep.subr.mxu0 %v333
      %460 = vmatpush1.msra.mxu0 %v332
      %461 = vmatprep.subr.mxu0 %v355
      %462 = vmatpush1.msra.mxu0 %v354
      %463 = vmatprep.subr.mxu0 %v241
      %464 = vmatpush1.msra.mxu0 %v240
      %465 = vmatprep.subr.mxu0 %v377
      %466 = vmatpush1.msra.mxu0 %v376
      %467 = vmatprep.subr.mxu0 %v399
      %468 = vmatpush1.msra.mxu0 %v398
      %469 = vmatprep.subr.mxu0 %v421
      %470 = vmatpush1.msra.mxu0 %v420
      %471 = vmatprep.subr.mxu0 %v443
      %472 = vmatpush1.msra.mxu0 %v442
      %473 = vmatprep.subr.mxu0 0.0
      %474 = vmatpush1.msra.mxu0 0.0
      %475 = vmatprep.subr.mxu0 0.0
      %476 = vmatpush1.msra.mxu0 0.0
      %477 = vmatprep.subr.mxu0 0.0
      %478 = vmatpush1.msra.mxu0 0.0
      %479 = vmatprep.subr.mxu0 0.0
      %480 = vmatpush1.msra.mxu0 0.0
      %481 = vmatprep.subr.mxu0 0.0
      %482 = vmatpush1.msra.mxu0 0.0
      %483 = vmatprep.subr.mxu0 0.0
      %484 = vmatpush1.msra.mxu0 0.0
      %485 = vmatprep.subr.mxu0 0.0
      %486 = vmatpush1.msra.mxu0 0.0
      %487 = vmatprep.subr.mxu0 0.0
      %488 = vmatpush1.msra.mxu0 0.0
      %489 = vmatprep.subr.mxu0 0.0
      %490 = vmatpush1.msra.mxu0 0.0
      %491 = vmatprep.subr.mxu0 0.0
      %492 = vmatpush1.msra.mxu0 0.0
      %493 = vmatprep.subr.mxu0 0.0
      %494 = vmatpush1.msra.mxu0 0.0
      %495 = vmatprep.subr.mxu0 0.0
      %496 = vmatpush1.msra.mxu0 0.0
      %497 = vmatprep.subr.mxu0 0.0
      %498 = vmatpush1.msra.mxu0 0.0
      %499 = vmatprep.subr.mxu0 0.0
      %500 = vmatpush1.msra.mxu0 0.0
      %501 = vmatprep.subr.mxu0 0.0
      %502 = vmatpush1.msra.mxu0 0.0
      %503 = vmatprep.subr.mxu0 0.0
      %504 = vmatpush1.msra.mxu0 0.0
      %505 = vmatprep.subr.mxu0 0.0
      %506 = vmatpush1.msra.mxu0 0.0
      %507 = vmatprep.subr.mxu0 0.0
      %508 = vmatpush1.msra.mxu0 0.0
      %509 = vmatprep.subr.mxu0 0.0
      %510 = vmatpush1.msra.mxu0 0.0
      %511 = vmatprep.subr.mxu0 0.0
      %512 = vmatpush1.msra.mxu0 0.0
      %513 = vmatprep.subr.mxu0 0.0
      %514 = vmatpush1.msra.mxu0 0.0
      %515 = vmatprep.subr.mxu0 0.0
      %516 = vmatpush1.msra.mxu0 0.0
      %517 = vmatprep.subr.mxu0 0.0
      %518 = vmatpush1.msra.mxu0 0.0
      %519 = vmatprep.mubr.f32.mxu0 0.0
      %520 = vmatmul.mubr.f32.gmra.mrb[0].mxu0 %v453
      %v521 = vpop.f32.mrb[0].mxu0
      %v522 = vadd.f32 %v449, %v521
      %v523 = vpop.f32.mrb[0].mxu0
      %v524 = vadd.f32 %v449, %v523
      %525 = vdwg.mxu0
      %526 = vmatprep.subr.mxu0 %v291
      %527 = vmatpush1.msra.mxu0 %v290
      %528 = vmatprep.subr.mxu0 %v313
      %529 = vmatpush1.msra.mxu0 %v312
      %530 = vmatprep.subr.mxu0 %v335
      %531 = vmatpush1.msra.mxu0 %v334
      %532 = vmatprep.subr.mxu0 %v357
      %533 = vmatpush1.msra.mxu0 %v356
      %534 = vmatprep.subr.mxu0 %v267
      %535 = vmatpush1.msra.mxu0 %v266
      %536 = vmatprep.subr.mxu0 %v379
      %537 = vmatpush1.msra.mxu0 %v378
      %538 = vmatprep.subr.mxu0 %v401
      %539 = vmatpush1.msra.mxu0 %v400
      %540 = vmatprep.subr.mxu0 %v423
      %541 = vmatpush1.msra.mxu0 %v422
      %542 = vmatprep.subr.mxu0 %v445
      %543 = vmatpush1.msra.mxu0 %v444
      %544 = vmatprep.subr.mxu0 0.0
      %545 = vmatpush1.msra.mxu0 0.0
      %546 = vmatprep.subr.mxu0 0.0
      %547 = vmatpush1.msra.mxu0 0.0
      %548 = vmatprep.subr.mxu0 0.0
      %549 = vmatpush1.msra.mxu0 0.0
      %550 = vmatprep.subr.mxu0 0.0
      %551 = vmatpush1.msra.mxu0 0.0
      %552 = vmatprep.subr.mxu0 0.0
      %553 = vmatpush1.msra.mxu0 0.0
      %554 = vmatprep.subr.mxu0 0.0
      %555 = vmatpush1.msra.mxu0 0.0
      %556 = vmatprep.subr.mxu0 0.0
      %557 = vmatpush1.msra.mxu0 0.0
      %558 = vmatprep.subr.mxu0 0.0
      %559 = vmatpush1.msra.mxu0 0.0
      %560 = vmatprep.subr.mxu0 0.0
      %561 = vmatpush1.msra.mxu0 0.0
      %562 = vmatprep.subr.mxu0 0.0
      %563 = vmatpush1.msra.mxu0 0.0
      %564 = vmatprep.subr.mxu0 0.0
      %565 = vmatpush1.msra.mxu0 0.0
      %566 = vmatprep.subr.mxu0 0.0
      %567 = vmatpush1.msra.mxu0 0.0
      %568 = vmatprep.subr.mxu0 0.0
      %569 = vmatpush1.msra.mxu0 0.0
      %570 = vmatprep.subr.mxu0 0.0
      %571 = vmatpush1.msra.mxu0 0.0
      %572 = vmatprep.subr.mxu0 0.0
      %573 = vmatpush1.msra.mxu0 0.0
      %574 = vmatprep.subr.mxu0 0.0
      %575 = vmatpush1.msra.mxu0 0.0
      %576 = vmatprep.subr.mxu0 0.0
      %577 = vmatpush1.msra.mxu0 0.0
      %578 = vmatprep.subr.mxu0 0.0
      %579 = vmatpush1.msra.mxu0 0.0
      %580 = vmatprep.subr.mxu0 0.0
      %581 = vmatpush1.msra.mxu0 0.0
      %582 = vmatprep.subr.mxu0 0.0
      %583 = vmatpush1.msra.mxu0 0.0
      %584 = vmatprep.subr.mxu0 0.0
      %585 = vmatpush1.msra.mxu0 0.0
      %586 = vmatprep.subr.mxu0 0.0
      %587 = vmatpush1.msra.mxu0 0.0
      %588 = vmatprep.subr.mxu0 0.0
      %589 = vmatpush1.msra.mxu0 0.0
      %590 = vmatprep.mubr.f32.mxu0 0.0
      %591 = vmatmul.mubr.f32.gmra.mrb[0].mxu0 %v453
      %v592 = vpop.f32.mrb[0].mxu0
      %v593 = vadd.f32 %v449, %v592
      %v594 = vpop.f32.mrb[0].mxu0
      %v595 = vadd.f32 %v449, %v594
      %596 = vdwg.mxu0
      %vm597 = vcmask 1043456
      %v598 = vsel %vm597, %v522, 0.0
      %v599 = vsel %vm597, %v524, 0.0
      %v600 = vadd.f32 %v598, %v599
      %601 = vadd.xlane.f32.xlu0 %v600
      %v602 = vpop.xlane.xlu0 %601
      %v603 = vmul.f32 %v602, 0.00390625
      %v604 = vsub.f32 %v522, %v603
      %v605 = vsub.f32 %v524, %v603
      %v606 = vmul.f32 %v604, %v604
      %v607 = vmul.f32 %v605, %v605
      %v608 = vsel %vm597, %v606, 0.0
      %v609 = vsel %vm597, %v607, 0.0
      %v610 = vadd.f32 %v608, %v609
      %611 = vadd.xlane.f32.xlu0 %v610
      %v612 = vpop.xlane.xlu0 %611
      %v613 = vmul.f32 %v612, 0.00390625
      %v614 = vadd.f32 %v613, 1e-05
      %v615 = vrsqrt.pop %v614
      %v616 = vmul.f32 %v604, %v615
      %v617 = vmul.f32 %v605, %v615
      %618 = vset.pattern.permute.xlu0 2
      %619 = vperm.xlu0 %618, %v202
      %v620 = vpop.permute.xlu0 %619
      %v622 = vmul.f32 %v616, %v620
      %v623 = vmul.f32 %v617, %v620
      %624 = vset.pattern.permute.xlu0 3
      %625 = vperm.xlu0 %624, %v202
      %v626 = vpop.permute.xlu0 %625
      %v628 = vadd.f32 %v622, %v626
      %v629 = vadd.f32 %v623, %v626
      %vm630 = vcmp.ge.f32.partialorder %v628, 0.0
      %vm631 = vcmp.ge.f32.partialorder %v629, 0.0
      %v632 = vmul.f32 %v628, 0.01
      %v633 = vmul.f32 %v629, 0.01
      %v634 = vsel %vm630, %v628, %v632
      %v635 = vsel %vm631, %v629, %v633
      %v636 = vsel %vm597, %v593, 0.0
      %v637 = vsel %vm597, %v595, 0.0
      %v638 = vadd.f32 %v636, %v637
      %639 = vadd.xlane.f32.xlu0 %v638
      %v640 = vpop.xlane.xlu0 %639
      %v641 = vmul.f32 %v640, 0.00390625
      %v642 = vsub.f32 %v593, %v641
      %v643 = vsub.f32 %v595, %v641
      %v644 = vmul.f32 %v642, %v642
      %v645 = vmul.f32 %v643, %v643
      %v646 = vsel %vm597, %v644, 0.0
      %v647 = vsel %vm597, %v645, 0.0
      %v648 = vadd.f32 %v646, %v647
      %649 = vadd.xlane.f32.xlu0 %v648
      %v650 = vpop.xlane.xlu0 %649
      %v651 = vmul.f32 %v650, 0.00390625
      %v652 = vadd.f32 %v651, 1e-05
      %v653 = vrsqrt.pop %v652
      %v654 = vmul.f32 %v642, %v653
      %v655 = vmul.f32 %v643, %v653
      %v656 = vmul.f32 %v654, %v620
      %v657 = vmul.f32 %v655, %v620
      %v658 = vadd.f32 %v656, %v626
      %v659 = vadd.f32 %v657, %v626
      %vm660 = vcmp.ge.f32.partialorder %v658, 0.0
      %vm661 = vcmp.ge.f32.partialorder %v659, 0.0
      %v662 = vmul.f32 %v658, 0.01
      %v663 = vmul.f32 %v659, 0.01
      %v664 = vsel %vm660, %v658, %v662
      %v665 = vsel %vm661, %v659, %v663
      %v666 = vld [vmem:[%s2 + $0x4] sm:$0xf]
      %667 = vrot.lane.b32.xlu0 %v634, 17
      %v668 = vpop.permute.xlu0 %667
      %669 = vrot.lane.b32.xlu0 %v635, 17
      %v670 = vpop.permute.xlu0 %669
      %671 = vrot.lane.b32.xlu0 %v664, 17
      %v672 = vpop.permute.xlu0 %671
      %673 = vrot.lane.b32.xlu0 %v665, 17
      %v674 = vpop.permute.xlu0 %673
      %v675 = vsel %vm279, %v672, %v674
      %v676 = vsel %vm279, %v670, %v672
      %v677 = vsel %vm279, %v668, %v670
      %v678 = vsel %vm279, %v674, %v668
      %v679 = vld [vmem:[%s1] sm:$0xf]
      %v680 = vld [vmem:[%s1 + $0x8] sm:$0xf]
      %v681 = vld [vmem:[%s1 + $0x10] sm:$0xf]
      %v682 = vld [vmem:[%s1 + $0x18] sm:$0xf]
      %v683 = vmul.f32 %v678, %v679
      %v684 = vmul.f32 %v677, %v680
      %v685 = vmul.f32 %v676, %v681
      %v686 = vmul.f32 %v675, %v682
      %687 = vrot.lane.b32.xlu0 %v634, 16
      %v688 = vpop.permute.xlu0 %687
      %689 = vrot.lane.b32.xlu0 %v635, 16
      %v690 = vpop.permute.xlu0 %689
      %691 = vrot.lane.b32.xlu0 %v664, 16
      %v692 = vpop.permute.xlu0 %691
      %693 = vrot.lane.b32.xlu0 %v665, 16
      %v694 = vpop.permute.xlu0 %693
      %v695 = vsel %vm300, %v692, %v694
      %v696 = vsel %vm300, %v690, %v692
      %v697 = vsel %vm300, %v688, %v690
      %v698 = vsel %vm300, %v694, %v688
      %v699 = vld [vmem:[%s305] sm:$0xf]
      %v700 = vld [vmem:[%s305 + $0x8] sm:$0xf]
      %v701 = vld [vmem:[%s305 + $0x10] sm:$0xf]
      %v702 = vld [vmem:[%s305 + $0x18] sm:$0xf]
      %v703 = vmul.f32 %v698, %v699
      %v704 = vmul.f32 %v697, %v700
      %v705 = vmul.f32 %v696, %v701
      %v706 = vmul.f32 %v695, %v702
      %707 = vrot.lane.b32.xlu0 %v634, 15
      %v708 = vpop.permute.xlu0 %707
      %709 = vrot.lane.b32.xlu0 %v635, 15
      %v710 = vpop.permute.xlu0 %709
      %711 = vrot.lane.b32.xlu0 %v664, 15
      %v712 = vpop.permute.xlu0 %711
      %713 = vrot.lane.b32.xlu0 %v665, 15
      %v714 = vpop.permute.xlu0 %713
      %v715 = vsel %vm322, %v712, %v714
      %v716 = vsel %vm322, %v710, %v712
      %v717 = vsel %vm322, %v708, %v710
      %v718 = vsel %vm322, %v714, %v708
      %v719 = vld [vmem:[%s327] sm:$0xf]
      %v720 = vld [vmem:[%s327 + $0x8] sm:$0xf]
      %v721 = vld [vmem:[%s327 + $0x10] sm:$0xf]
      %v722 = vld [vmem:[%s327 + $0x18] sm:$0xf]
      %v723 = vmul.f32 %v718, %v719
      %v724 = vmul.f32 %v717, %v720
      %v725 = vmul.f32 %v716, %v721
      %v726 = vmul.f32 %v715, %v722
      %727 = vrot.lane.b32.xlu0 %v634, 1
      %v728 = vpop.permute.xlu0 %727
      %729 = vrot.lane.b32.xlu0 %v635, 1
      %v730 = vpop.permute.xlu0 %729
      %731 = vrot.lane.b32.xlu0 %v664, 1
      %v732 = vpop.permute.xlu0 %731
      %733 = vrot.lane.b32.xlu0 %v665, 1
      %v734 = vpop.permute.xlu0 %733
      %v735 = vsel %vm344, %v732, %v734
      %v736 = vsel %vm344, %v730, %v732
      %v737 = vsel %vm344, %v728, %v730
      %v738 = vsel %vm344, %v734, %v728
      %v739 = vld [vmem:[%s349] sm:$0xf]
      %v740 = vld [vmem:[%s349 + $0x8] sm:$0xf]
      %v741 = vld [vmem:[%s349 + $0x10] sm:$0xf]
      %v742 = vld [vmem:[%s349 + $0x18] sm:$0xf]
      %v743 = vmul.f32 %v738, %v739
      %v744 = vmul.f32 %v737, %v740
      %v745 = vmul.f32 %v736, %v741
      %v746 = vmul.f32 %v735, %v742
      %747 = vrot.lane.b32.xlu0 %v634, 127
      %v748 = vpop.permute.xlu0 %747
      %749 = vrot.lane.b32.xlu0 %v635, 127
      %v750 = vpop.permute.xlu0 %749
      %751 = vrot.lane.b32.xlu0 %v664, 127
      %v752 = vpop.permute.xlu0 %751
      %753 = vrot.lane.b32.xlu0 %v665, 127
      %v754 = vpop.permute.xlu0 %753
      %v755 = vsel %vm366, %v752, %v754
      %v756 = vsel %vm366, %v750, %v752
      %v757 = vsel %vm366, %v748, %v750
      %v758 = vsel %vm366, %v754, %v748
      %v759 = vld [vmem:[%s371] sm:$0xf]
      %v760 = vld [vmem:[%s371 + $0x8] sm:$0xf]
      %v761 = vld [vmem:[%s371 + $0x10] sm:$0xf]
      %v762 = vld [vmem:[%s371 + $0x18] sm:$0xf]
      %v763 = vmul.f32 %v757, %v759
      %v764 = vmul.f32 %v756, %v760
      %v765 = vmul.f32 %v755, %v761
      %v766 = vmul.f32 %v758, %v762
      %767 = vrot.lane.b32.xlu0 %v634, 113
      %v768 = vpop.permute.xlu0 %767
      %769 = vrot.lane.b32.xlu0 %v635, 113
      %v770 = vpop.permute.xlu0 %769
      %771 = vrot.lane.b32.xlu0 %v664, 113
      %v772 = vpop.permute.xlu0 %771
      %773 = vrot.lane.b32.xlu0 %v665, 113
      %v774 = vpop.permute.xlu0 %773
      %v775 = vsel %vm388, %v772, %v774
      %v776 = vsel %vm388, %v770, %v772
      %v777 = vsel %vm388, %v768, %v770
      %v778 = vsel %vm388, %v774, %v768
      %v779 = vld [vmem:[%s393] sm:$0xf]
      %v780 = vld [vmem:[%s393 + $0x8] sm:$0xf]
      %v781 = vld [vmem:[%s393 + $0x10] sm:$0xf]
      %v782 = vld [vmem:[%s393 + $0x18] sm:$0xf]
      %v783 = vmul.f32 %v777, %v779
      %v784 = vmul.f32 %v776, %v780
      %v785 = vmul.f32 %v775, %v781
      %v786 = vmul.f32 %v778, %v782
      %787 = vrot.lane.b32.xlu0 %v634, 112
      %v788 = vpop.permute.xlu0 %787
      %789 = vrot.lane.b32.xlu0 %v635, 112
      %v790 = vpop.permute.xlu0 %789
      %791 = vrot.lane.b32.xlu0 %v664, 112
      %v792 = vpop.permute.xlu0 %791
      %793 = vrot.lane.b32.xlu0 %v665, 112
      %v794 = vpop.permute.xlu0 %793
      %v795 = vsel %vm410, %v792, %v794
      %v796 = vsel %vm410, %v790, %v792
      %v797 = vsel %vm410, %v788, %v790
      %v798 = vsel %vm410, %v794, %v788
      %v799 = vld [vmem:[%s415] sm:$0xf]
      %v800 = vld [vmem:[%s415 + $0x8] sm:$0xf]
      %v801 = vld [vmem:[%s415 + $0x10] sm:$0xf]
      %v802 = vld [vmem:[%s415 + $0x18] sm:$0xf]
      %v803 = vmul.f32 %v797, %v799
      %v804 = vmul.f32 %v796, %v800
      %v805 = vmul.f32 %v795, %v801
      %v806 = vmul.f32 %v798, %v802
      %807 = vrot.lane.b32.xlu0 %v634, 111
      %v808 = vpop.permute.xlu0 %807
      %809 = vrot.lane.b32.xlu0 %v635, 111
      %v810 = vpop.permute.xlu0 %809
      %811 = vrot.lane.b32.xlu0 %v664, 111
      %v812 = vpop.permute.xlu0 %811
      %813 = vrot.lane.b32.xlu0 %v665, 111
      %v814 = vpop.permute.xlu0 %813
      %v815 = vsel %vm432, %v812, %v814
      %v816 = vsel %vm432, %v810, %v812
      %v817 = vsel %vm432, %v808, %v810
      %v818 = vsel %vm432, %v814, %v808
      %v819 = vld [vmem:[%s437] sm:$0xf]
      %v820 = vld [vmem:[%s437 + $0x8] sm:$0xf]
      %v821 = vld [vmem:[%s437 + $0x10] sm:$0xf]
      %v822 = vld [vmem:[%s437 + $0x18] sm:$0xf]
      %v823 = vmul.f32 %v817, %v819
      %v824 = vmul.f32 %v816, %v820
      %v825 = vmul.f32 %v815, %v821
      %v826 = vmul.f32 %v818, %v822
      %v831 = vrot.slane %v703, 4
      %v832 = vrot.slane %v704, 4
      %v833 = vrot.slane %v705, 4
      %v834 = vrot.slane %v706, 4
      %v843 = vrot.slane %v743, 4
      %v844 = vrot.slane %v744, 4
      %v845 = vrot.slane %v745, 4
      %v846 = vrot.slane %v746, 4
      %v855 = vrot.slane %v763, 4
      %v856 = vrot.slane %v764, 4
      %v857 = vrot.slane %v765, 4
      %v858 = vrot.slane %v766, 4
      %v867 = vrot.slane %v803, 4
      %v868 = vrot.slane %v804, 4
      %v869 = vrot.slane %v805, 4
      %v870 = vrot.slane %v806, 4
      %v875 = vsel %vm597, %v683, %v831
      %v876 = vsel %vm597, %v684, %v832
      %v877 = vsel %vm597, %v685, %v833
      %v878 = vsel %vm597, %v686, %v834
      %v879 = vsel %vm597, %v723, %v843
      %v880 = vsel %vm597, %v724, %v844
      %v881 = vsel %vm597, %v725, %v845
      %v882 = vsel %vm597, %v726, %v846
      %v883 = vsel %vm597, %v634, %v855
      %v884 = vsel %vm597, %v635, %v856
      %v885 = vsel %vm597, %v664, %v857
      %v886 = vsel %vm597, %v665, %v858
      %v887 = vsel %vm597, %v783, %v867
      %v888 = vsel %vm597, %v784, %v868
      %v889 = vsel %vm597, %v785, %v869
      %v890 = vsel %vm597, %v786, %v870
      %891 = vset.pattern.permute.xlu0 7
      %892 = vperm.xlu0 %891, %v202
      %v893 = vpop.permute.xlu0 %892
      %vm895 = vcmask 293888
      %v897 = vsel %vm895, %v666, 0
      %v900 = vsel %vm597, %v823, 0
      %v903 = vsel %vm597, %v824, 0
      %v906 = vsel %vm597, %v825, 0
      %v909 = vsel %vm597, %v826, 0
      %911 = vmatprep.subr.mxu0 %v876
      %912 = vmatpush1.msra.mxu0 %v875
      %913 = vmatprep.subr.mxu0 %v880
      %914 = vmatpush1.msra.mxu0 %v879
      %915 = vmatprep.subr.mxu0 %v884
      %916 = vmatpush1.msra.mxu0 %v883
      %917 = vmatprep.subr.mxu0 %v888
      %918 = vmatpush1.msra.mxu0 %v887
      %919 = vmatprep.subr.mxu0 %v903
      %920 = vmatpush1.msra.mxu0 %v900
      %921 = vmatprep.subr.mxu0 0.0
      %922 = vmatpush1.msra.mxu0 0.0
      %923 = vmatprep.subr.mxu0 0.0
      %924 = vmatpush1.msra.mxu0 0.0
      %925 = vmatprep.subr.mxu0 0.0
      %926 = vmatpush1.msra.mxu0 0.0
      %927 = vmatprep.subr.mxu0 0.0
      %928 = vmatpush1.msra.mxu0 0.0
      %929 = vmatprep.subr.mxu0 0.0
      %930 = vmatpush1.msra.mxu0 0.0
      %931 = vmatprep.subr.mxu0 0.0
      %932 = vmatpush1.msra.mxu0 0.0
      %933 = vmatprep.subr.mxu0 0.0
      %934 = vmatpush1.msra.mxu0 0.0
      %935 = vmatprep.subr.mxu0 0.0
      %936 = vmatpush1.msra.mxu0 0.0
      %937 = vmatprep.subr.mxu0 0.0
      %938 = vmatpush1.msra.mxu0 0.0
      %939 = vmatprep.subr.mxu0 0.0
      %940 = vmatpush1.msra.mxu0 0.0
      %941 = vmatprep.subr.mxu0 0.0
      %942 = vmatpush1.msra.mxu0 0.0
      %943 = vmatprep.subr.mxu0 0.0
      %944 = vmatpush1.msra.mxu0 0.0
      %945 = vmatprep.subr.mxu0 0.0
      %946 = vmatpush1.msra.mxu0 0.0
      %947 = vmatprep.subr.mxu0 0.0
      %948 = vmatpush1.msra.mxu0 0.0
      %949 = vmatprep.subr.mxu0 0.0
      %950 = vmatpush1.msra.mxu0 0.0
      %951 = vmatprep.subr.mxu0 0.0
      %952 = vmatpush1.msra.mxu0 0.0
      %953 = vmatprep.subr.mxu0 0.0
      %954 = vmatpush1.msra.mxu0 0.0
      %955 = vmatprep.subr.mxu0 0.0
      %956 = vmatpush1.msra.mxu0 0.0
      %957 = vmatprep.subr.mxu0 0.0
      %958 = vmatpush1.msra.mxu0 0.0
      %959 = vmatprep.subr.mxu0 0.0
      %960 = vmatpush1.msra.mxu0 0.0
      %961 = vmatprep.subr.mxu0 0.0
      %962 = vmatpush1.msra.mxu0 0.0
      %963 = vmatprep.subr.mxu0 0.0
      %964 = vmatpush1.msra.mxu0 0.0
      %965 = vmatprep.subr.mxu0 0.0
      %966 = vmatpush1.msra.mxu0 0.0
      %967 = vmatprep.subr.mxu0 0.0
      %968 = vmatpush1.msra.mxu0 0.0
      %969 = vmatprep.subr.mxu0 0.0
      %970 = vmatpush1.msra.mxu0 0.0
      %971 = vmatprep.subr.mxu0 0.0
      %972 = vmatpush1.msra.mxu0 0.0
      %973 = vmatprep.subr.mxu0 0.0
      %974 = vmatpush1.msra.mxu0 0.0
      %975 = vmatprep.mubr.f32.mxu0 0.0
      %976 = vmatmul.mubr.f32.gmra.mrb[0].mxu0 %v897
      %v977 = vpop.f32.mrb[0].mxu0
      %v978 = vadd.f32 %v893, %v977
      %v979 = vpop.f32.mrb[0].mxu0
      %v980 = vadd.f32 %v893, %v979
      %981 = vdwg.mxu0
      %982 = vmatprep.subr.mxu0 %v878
      %983 = vmatpush1.msra.mxu0 %v877
      %984 = vmatprep.subr.mxu0 %v882
      %985 = vmatpush1.msra.mxu0 %v881
      %986 = vmatprep.subr.mxu0 %v886
      %987 = vmatpush1.msra.mxu0 %v885
      %988 = vmatprep.subr.mxu0 %v890
      %989 = vmatpush1.msra.mxu0 %v889
      %990 = vmatprep.subr.mxu0 %v909
      %991 = vmatpush1.msra.mxu0 %v906
      %992 = vmatprep.subr.mxu0 0.0
      %993 = vmatpush1.msra.mxu0 0.0
      %994 = vmatprep.subr.mxu0 0.0
      %995 = vmatpush1.msra.mxu0 0.0
      %996 = vmatprep.subr.mxu0 0.0
      %997 = vmatpush1.msra.mxu0 0.0
      %998 = vmatprep.subr.mxu0 0.0
      %999 = vmatpush1.msra.mxu0 0.0
      %1000 = vmatprep.subr.mxu0 0.0
      %1001 = vmatpush1.msra.mxu0 0.0
      %1002 = vmatprep.subr.mxu0 0.0
      %1003 = vmatpush1.msra.mxu0 0.0
      %1004 = vmatprep.subr.mxu0 0.0
      %1005 = vmatpush1.msra.mxu0 0.0
      %1006 = vmatprep.subr.mxu0 0.0
      %1007 = vmatpush1.msra.mxu0 0.0
      %1008 = vmatprep.subr.mxu0 0.0
      %1009 = vmatpush1.msra.mxu0 0.0
      %1010 = vmatprep.subr.mxu0 0.0
      %1011 = vmatpush1.msra.mxu0 0.0
      %1012 = vmatprep.subr.mxu0 0.0
      %1013 = vmatpush1.msra.mxu0 0.0
      %1014 = vmatprep.subr.mxu0 0.0
      %1015 = vmatpush1.msra.mxu0 0.0
      %1016 = vmatprep.subr.mxu0 0.0
      %1017 = vmatpush1.msra.mxu0 0.0
      %1018 = vmatprep.subr.mxu0 0.0
      %1019 = vmatpush1.msra.mxu0 0.0
      %1020 = vmatprep.subr.mxu0 0.0
      %1021 = vmatpush1.msra.mxu0 0.0
      %1022 = vmatprep.subr.mxu0 0.0
      %1023 = vmatpush1.msra.mxu0 0.0
      %1024 = vmatprep.subr.mxu0 0.0
      %1025 = vmatpush1.msra.mxu0 0.0
      %1026 = vmatprep.subr.mxu0 0.0
      %1027 = vmatpush1.msra.mxu0 0.0
      %1028 = vmatprep.subr.mxu0 0.0
      %1029 = vmatpush1.msra.mxu0 0.0
      %1030 = vmatprep.subr.mxu0 0.0
      %1031 = vmatpush1.msra.mxu0 0.0
      %1032 = vmatprep.subr.mxu0 0.0
      %1033 = vmatpush1.msra.mxu0 0.0
      %1034 = vmatprep.subr.mxu0 0.0
      %1035 = vmatpush1.msra.mxu0 0.0
      %1036 = vmatprep.subr.mxu0 0.0
      %1037 = vmatpush1.msra.mxu0 0.0
      %1038 = vmatprep.subr.mxu0 0.0
      %1039 = vmatpush1.msra.mxu0 0.0
      %1040 = vmatprep.subr.mxu0 0.0
      %1041 = vmatpush1.msra.mxu0 0.0
      %1042 = vmatprep.subr.mxu0 0.0
      %1043 = vmatpush1.msra.mxu0 0.0
      %1044 = vmatprep.subr.mxu0 0.0
      %1045 = vmatpush1.msra.mxu0 0.0
      %1046 = vmatprep.mubr.f32.mxu0 0.0
      %1047 = vmatmul.mubr.f32.gmra.mrb[0].mxu0 %v897
      %v1048 = vpop.f32.mrb[0].mxu0
      %v1049 = vadd.f32 %v893, %v1048
      %v1050 = vpop.f32.mrb[0].mxu0
      %v1051 = vadd.f32 %v893, %v1050
      %1052 = vdwg.mxu0
      %v1053 = vsel %vm597, %v978, 0.0
      %v1054 = vsel %vm597, %v980, 0.0
      %v1055 = vadd.f32 %v1053, %v1054
      %1056 = vadd.xlane.f32.xlu0 %v1055
      %v1057 = vpop.xlane.xlu0 %1056
      %v1058 = vmul.f32 %v1057, 0.00390625
      %v1059 = vsub.f32 %v978, %v1058
      %v1060 = vsub.f32 %v980, %v1058
      %v1061 = vmul.f32 %v1059, %v1059
      %v1062 = vmul.f32 %v1060, %v1060
      %v1063 = vsel %vm597, %v1061, 0.0
      %v1064 = vsel %vm597, %v1062, 0.0
      %v1065 = vadd.f32 %v1063, %v1064
      %1066 = vadd.xlane.f32.xlu0 %v1065
      %v1067 = vpop.xlane.xlu0 %1066
      %v1068 = vmul.f32 %v1067, 0.00390625
      %v1069 = vadd.f32 %v1068, 1e-05
      %v1070 = vrsqrt.pop %v1069
      %v1071 = vmul.f32 %v1059, %v1070
      %v1072 = vmul.f32 %v1060, %v1070
      %1073 = vset.pattern.permute.xlu0 4
      %1074 = vperm.xlu0 %1073, %v202
      %v1075 = vpop.permute.xlu0 %1074
      %v1077 = vmul.f32 %v1071, %v1075
      %v1078 = vmul.f32 %v1072, %v1075
      %1079 = vset.pattern.permute.xlu0 5
      %1080 = vperm.xlu0 %1079, %v202
      %v1081 = vpop.permute.xlu0 %1080
      %v1083 = vadd.f32 %v1077, %v1081
      %v1084 = vadd.f32 %v1078, %v1081
      %vm1085 = vcmp.ge.f32.partialorder %v1083, 0.0
      %vm1086 = vcmp.ge.f32.partialorder %v1084, 0.0
      %v1087 = vmul.f32 %v1083, 0.01
      %v1088 = vmul.f32 %v1084, 0.01
      %v1089 = vsel %vm1085, %v1083, %v1087
      %v1090 = vsel %vm1086, %v1084, %v1088
      %v1091 = vsel %vm597, %v1049, 0.0
      %v1092 = vsel %vm597, %v1051, 0.0
      %v1093 = vadd.f32 %v1091, %v1092
      %1094 = vadd.xlane.f32.xlu0 %v1093
      %v1095 = vpop.xlane.xlu0 %1094
      %v1096 = vmul.f32 %v1095, 0.00390625
      %v1097 = vsub.f32 %v1049, %v1096
      %v1098 = vsub.f32 %v1051, %v1096
      %v1099 = vmul.f32 %v1097, %v1097
      %v1100 = vmul.f32 %v1098, %v1098
      %v1101 = vsel %vm597, %v1099, 0.0
      %v1102 = vsel %vm597, %v1100, 0.0
      %v1103 = vadd.f32 %v1101, %v1102
      %1104 = vadd.xlane.f32.xlu0 %v1103
      %v1105 = vpop.xlane.xlu0 %1104
      %v1106 = vmul.f32 %v1105, 0.00390625
      %v1107 = vadd.f32 %v1106, 1e-05
      %v1108 = vrsqrt.pop %v1107
      %v1109 = vmul.f32 %v1097, %v1108
      %v1110 = vmul.f32 %v1098, %v1108
      %v1111 = vmul.f32 %v1109, %v1075
      %v1112 = vmul.f32 %v1110, %v1075
      %v1113 = vadd.f32 %v1111, %v1081
      %v1114 = vadd.f32 %v1112, %v1081
      %vm1115 = vcmp.ge.f32.partialorder %v1113, 0.0
      %vm1116 = vcmp.ge.f32.partialorder %v1114, 0.0
      %v1117 = vmul.f32 %v1113, 0.01
      %v1118 = vmul.f32 %v1114, 0.01
      %v1119 = vsel %vm1115, %v1113, %v1117
      %v1120 = vsel %vm1116, %v1114, %v1118
      %v1121 = vld [vmem:[%s2 + $0x8] sm:$0xf]
      %1122 = vrot.lane.b32.xlu0 %v1089, 17
      %v1123 = vpop.permute.xlu0 %1122
      %1124 = vrot.lane.b32.xlu0 %v1090, 17
      %v1125 = vpop.permute.xlu0 %1124
      %1126 = vrot.lane.b32.xlu0 %v1119, 17
      %v1127 = vpop.permute.xlu0 %1126
      %1128 = vrot.lane.b32.xlu0 %v1120, 17
      %v1129 = vpop.permute.xlu0 %1128
      %v1130 = vsel %vm279, %v1127, %v1129
      %v1131 = vsel %vm279, %v1125, %v1127
      %v1132 = vsel %vm279, %v1123, %v1125
      %v1133 = vsel %vm279, %v1129, %v1123
      %v1134 = vmul.f32 %v1133, %v679
      %v1135 = vmul.f32 %v1132, %v680
      %v1136 = vmul.f32 %v1131, %v681
      %v1137 = vmul.f32 %v1130, %v682
      %1138 = vrot.lane.b32.xlu0 %v1089, 16
      %v1139 = vpop.permute.xlu0 %1138
      %1140 = vrot.lane.b32.xlu0 %v1090, 16
      %v1141 = vpop.permute.xlu0 %1140
      %1142 = vrot.lane.b32.xlu0 %v1119, 16
      %v1143 = vpop.permute.xlu0 %1142
      %1144 = vrot.lane.b32.xlu0 %v1120, 16
      %v1145 = vpop.permute.xlu0 %1144
      %v1146 = vsel %vm300, %v1143, %v1145
      %v1147 = vsel %vm300, %v1141, %v1143
      %v1148 = vsel %vm300, %v1139, %v1141
      %v1149 = vsel %vm300, %v1145, %v1139
      %v1150 = vmul.f32 %v1149, %v699
      %v1151 = vmul.f32 %v1148, %v700
      %v1152 = vmul.f32 %v1147, %v701
      %v1153 = vmul.f32 %v1146, %v702
      %1154 = vrot.lane.b32.xlu0 %v1089, 15
      %v1155 = vpop.permute.xlu0 %1154
      %1156 = vrot.lane.b32.xlu0 %v1090, 15
      %v1157 = vpop.permute.xlu0 %1156
      %1158 = vrot.lane.b32.xlu0 %v1119, 15
      %v1159 = vpop.permute.xlu0 %1158
      %1160 = vrot.lane.b32.xlu0 %v1120, 15
      %v1161 = vpop.permute.xlu0 %1160
      %v1162 = vsel %vm322, %v1159, %v1161
      %v1163 = vsel %vm322, %v1157, %v1159
      %v1164 = vsel %vm322, %v1155, %v1157
      %v1165 = vsel %vm322, %v1161, %v1155
      %v1166 = vmul.f32 %v1165, %v719
      %v1167 = vmul.f32 %v1164, %v720
      %v1168 = vmul.f32 %v1163, %v721
      %v1169 = vmul.f32 %v1162, %v722
      %1170 = vrot.lane.b32.xlu0 %v1089, 1
      %v1171 = vpop.permute.xlu0 %1170
      %1172 = vrot.lane.b32.xlu0 %v1090, 1
      %v1173 = vpop.permute.xlu0 %1172
      %1174 = vrot.lane.b32.xlu0 %v1119, 1
      %v1175 = vpop.permute.xlu0 %1174
      %1176 = vrot.lane.b32.xlu0 %v1120, 1
      %v1177 = vpop.permute.xlu0 %1176
      %v1178 = vsel %vm344, %v1175, %v1177
      %v1179 = vsel %vm344, %v1173, %v1175
      %v1180 = vsel %vm344, %v1171, %v1173
      %v1181 = vsel %vm344, %v1177, %v1171
      %v1182 = vmul.f32 %v1181, %v739
      %v1183 = vmul.f32 %v1180, %v740
      %v1184 = vmul.f32 %v1179, %v741
      %v1185 = vmul.f32 %v1178, %v742
      %1186 = vrot.lane.b32.xlu0 %v1089, 127
      %v1187 = vpop.permute.xlu0 %1186
      %1188 = vrot.lane.b32.xlu0 %v1090, 127
      %v1189 = vpop.permute.xlu0 %1188
      %1190 = vrot.lane.b32.xlu0 %v1119, 127
      %v1191 = vpop.permute.xlu0 %1190
      %1192 = vrot.lane.b32.xlu0 %v1120, 127
      %v1193 = vpop.permute.xlu0 %1192
      %v1194 = vsel %vm366, %v1191, %v1193
      %v1195 = vsel %vm366, %v1189, %v1191
      %v1196 = vsel %vm366, %v1187, %v1189
      %v1197 = vsel %vm366, %v1193, %v1187
      %v1198 = vmul.f32 %v1196, %v759
      %v1199 = vmul.f32 %v1195, %v760
      %v1200 = vmul.f32 %v1194, %v761
      %v1201 = vmul.f32 %v1197, %v762
      %1202 = vrot.lane.b32.xlu0 %v1089, 113
      %v1203 = vpop.permute.xlu0 %1202
      %1204 = vrot.lane.b32.xlu0 %v1090, 113
      %v1205 = vpop.permute.xlu0 %1204
      %1206 = vrot.lane.b32.xlu0 %v1119, 113
      %v1207 = vpop.permute.xlu0 %1206
      %1208 = vrot.lane.b32.xlu0 %v1120, 113
      %v1209 = vpop.permute.xlu0 %1208
      %v1210 = vsel %vm388, %v1207, %v1209
      %v1211 = vsel %vm388, %v1205, %v1207
      %v1212 = vsel %vm388, %v1203, %v1205
      %v1213 = vsel %vm388, %v1209, %v1203
      %v1214 = vmul.f32 %v1212, %v779
      %v1215 = vmul.f32 %v1211, %v780
      %v1216 = vmul.f32 %v1210, %v781
      %v1217 = vmul.f32 %v1213, %v782
      %1218 = vrot.lane.b32.xlu0 %v1089, 112
      %v1219 = vpop.permute.xlu0 %1218
      %1220 = vrot.lane.b32.xlu0 %v1090, 112
      %v1221 = vpop.permute.xlu0 %1220
      %1222 = vrot.lane.b32.xlu0 %v1119, 112
      %v1223 = vpop.permute.xlu0 %1222
      %1224 = vrot.lane.b32.xlu0 %v1120, 112
      %v1225 = vpop.permute.xlu0 %1224
      %v1226 = vsel %vm410, %v1223, %v1225
      %v1227 = vsel %vm410, %v1221, %v1223
      %v1228 = vsel %vm410, %v1219, %v1221
      %v1229 = vsel %vm410, %v1225, %v1219
      %v1230 = vmul.f32 %v1228, %v799
      %v1231 = vmul.f32 %v1227, %v800
      %v1232 = vmul.f32 %v1226, %v801
      %v1233 = vmul.f32 %v1229, %v802
      %1234 = vrot.lane.b32.xlu0 %v1089, 111
      %v1235 = vpop.permute.xlu0 %1234
      %1236 = vrot.lane.b32.xlu0 %v1090, 111
      %v1237 = vpop.permute.xlu0 %1236
      %1238 = vrot.lane.b32.xlu0 %v1119, 111
      %v1239 = vpop.permute.xlu0 %1238
      %1240 = vrot.lane.b32.xlu0 %v1120, 111
      %v1241 = vpop.permute.xlu0 %1240
      %v1242 = vsel %vm432, %v1239, %v1241
      %v1243 = vsel %vm432, %v1237, %v1239
      %v1244 = vsel %vm432, %v1235, %v1237
      %v1245 = vsel %vm432, %v1241, %v1235
      %v1246 = vmul.f32 %v1244, %v819
      %v1247 = vmul.f32 %v1243, %v820
      %v1248 = vmul.f32 %v1242, %v821
      %v1249 = vmul.f32 %v1245, %v822
      %v1254 = vrot.slane %v1150, 4
      %v1255 = vrot.slane %v1151, 4
      %v1256 = vrot.slane %v1152, 4
      %v1257 = vrot.slane %v1153, 4
      %v1266 = vrot.slane %v1182, 4
      %v1267 = vrot.slane %v1183, 4
      %v1268 = vrot.slane %v1184, 4
      %v1269 = vrot.slane %v1185, 4
      %v1278 = vrot.slane %v1198, 4
      %v1279 = vrot.slane %v1199, 4
      %v1280 = vrot.slane %v1200, 4
      %v1281 = vrot.slane %v1201, 4
      %v1290 = vrot.slane %v1230, 4
      %v1291 = vrot.slane %v1231, 4
      %v1292 = vrot.slane %v1232, 4
      %v1293 = vrot.slane %v1233, 4
      %v1298 = vsel %vm597, %v1134, %v1254
      %v1299 = vsel %vm597, %v1135, %v1255
      %v1300 = vsel %vm597, %v1136, %v1256
      %v1301 = vsel %vm597, %v1137, %v1257
      %v1302 = vsel %vm597, %v1166, %v1266
      %v1303 = vsel %vm597, %v1167, %v1267
      %v1304 = vsel %vm597, %v1168, %v1268
      %v1305 = vsel %vm597, %v1169, %v1269
      %v1306 = vsel %vm597, %v1089, %v1278
      %v1307 = vsel %vm597, %v1090, %v1279
      %v1308 = vsel %vm597, %v1119, %v1280
      %v1309 = vsel %vm597, %v1120, %v1281
      %v1310 = vsel %vm597, %v1214, %v1290
      %v1311 = vsel %vm597, %v1215, %v1291
      %v1312 = vsel %vm597, %v1216, %v1292
      %v1313 = vsel %vm597, %v1217, %v1293
      %1314 = vset.pattern.permute.xlu0 8
      %1315 = vperm.xlu0 %1314, %v202
      %v1316 = vpop.permute.xlu0 %1315
      %v1319 = vsel %vm895, %v1121, 0
      %v1322 = vsel %vm597, %v1246, 0
      %v1325 = vsel %vm597, %v1247, 0
      %v1328 = vsel %vm597, %v1248, 0
      %v1331 = vsel %vm597, %v1249, 0
      %1333 = vmatprep.subr.mxu0 %v1299
      %1334 = vmatpush1.msra.mxu0 %v1298
      %1335 = vmatprep.subr.mxu0 %v1303
      %1336 = vmatpush1.msra.mxu0 %v1302
      %1337 = vmatprep.subr.mxu0 %v1307
      %1338 = vmatpush1.msra.mxu0 %v1306
      %1339 = vmatprep.subr.mxu0 %v1311
      %1340 = vmatpush1.msra.mxu0 %v1310
      %1341 = vmatprep.subr.mxu0 %v1325
      %1342 = vmatpush1.msra.mxu0 %v1322
      %1343 = vmatprep.subr.mxu0 0.0
      %1344 = vmatpush1.msra.mxu0 0.0
      %1345 = vmatprep.subr.mxu0 0.0
      %1346 = vmatpush1.msra.mxu0 0.0
      %1347 = vmatprep.subr.mxu0 0.0
      %1348 = vmatpush1.msra.mxu0 0.0
      %1349 = vmatprep.subr.mxu0 0.0
      %1350 = vmatpush1.msra.mxu0 0.0
      %1351 = vmatprep.subr.mxu0 0.0
      %1352 = vmatpush1.msra.mxu0 0.0
      %1353 = vmatprep.subr.mxu0 0.0
      %1354 = vmatpush1.msra.mxu0 0.0
      %1355 = vmatprep.subr.mxu0 0.0
      %1356 = vmatpush1.msra.mxu0 0.0
      %1357 = vmatprep.subr.mxu0 0.0
      %1358 = vmatpush1.msra.mxu0 0.0
      %1359 = vmatprep.subr.mxu0 0.0
      %1360 = vmatpush1.msra.mxu0 0.0
      %1361 = vmatprep.subr.mxu0 0.0
      %1362 = vmatpush1.msra.mxu0 0.0
      %1363 = vmatprep.subr.mxu0 0.0
      %1364 = vmatpush1.msra.mxu0 0.0
      %1365 = vmatprep.subr.mxu0 0.0
      %1366 = vmatpush1.msra.mxu0 0.0
      %1367 = vmatprep.subr.mxu0 0.0
      %1368 = vmatpush1.msra.mxu0 0.0
      %1369 = vmatprep.subr.mxu0 0.0
      %1370 = vmatpush1.msra.mxu0 0.0
      %1371 = vmatprep.subr.mxu0 0.0
      %1372 = vmatpush1.msra.mxu0 0.0
      %1373 = vmatprep.subr.mxu0 0.0
      %1374 = vmatpush1.msra.mxu0 0.0
      %1375 = vmatprep.subr.mxu0 0.0
      %1376 = vmatpush1.msra.mxu0 0.0
      %1377 = vmatprep.subr.mxu0 0.0
      %1378 = vmatpush1.msra.mxu0 0.0
      %1379 = vmatprep.subr.mxu0 0.0
      %1380 = vmatpush1.msra.mxu0 0.0
      %1381 = vmatprep.subr.mxu0 0.0
      %1382 = vmatpush1.msra.mxu0 0.0
      %1383 = vmatprep.subr.mxu0 0.0
      %1384 = vmatpush1.msra.mxu0 0.0
      %1385 = vmatprep.subr.mxu0 0.0
      %1386 = vmatpush1.msra.mxu0 0.0
      %1387 = vmatprep.subr.mxu0 0.0
      %1388 = vmatpush1.msra.mxu0 0.0
      %1389 = vmatprep.subr.mxu0 0.0
      %1390 = vmatpush1.msra.mxu0 0.0
      %1391 = vmatprep.subr.mxu0 0.0
      %1392 = vmatpush1.msra.mxu0 0.0
      %1393 = vmatprep.subr.mxu0 0.0
      %1394 = vmatpush1.msra.mxu0 0.0
      %1395 = vmatprep.subr.mxu0 0.0
      %1396 = vmatpush1.msra.mxu0 0.0
      %1397 = vmatprep.mubr.f32.mxu0 0.0
      %1398 = vmatmul.mubr.f32.gmra.mrb[0].mxu0 %v1319
      %v1399 = vpop.f32.mrb[0].mxu0
      %v1400 = vadd.f32 %v1316, %v1399
      %v1401 = vpop.f32.mrb[0].mxu0
      %v1402 = vadd.f32 %v1316, %v1401
      %1403 = vdwg.mxu0
      %1404 = vmatprep.subr.mxu0 %v1301
      %1405 = vmatpush1.msra.mxu0 %v1300
      %1406 = vmatprep.subr.mxu0 %v1305
      %1407 = vmatpush1.msra.mxu0 %v1304
      %1408 = vmatprep.subr.mxu0 %v1309
      %1409 = vmatpush1.msra.mxu0 %v1308
      %1410 = vmatprep.subr.mxu0 %v1313
      %1411 = vmatpush1.msra.mxu0 %v1312
      %1412 = vmatprep.subr.mxu0 %v1331
      %1413 = vmatpush1.msra.mxu0 %v1328
      %1414 = vmatprep.subr.mxu0 0.0
      %1415 = vmatpush1.msra.mxu0 0.0
      %1416 = vmatprep.subr.mxu0 0.0
      %1417 = vmatpush1.msra.mxu0 0.0
      %1418 = vmatprep.subr.mxu0 0.0
      %1419 = vmatpush1.msra.mxu0 0.0
      %1420 = vmatprep.subr.mxu0 0.0
      %1421 = vmatpush1.msra.mxu0 0.0
      %1422 = vmatprep.subr.mxu0 0.0
      %1423 = vmatpush1.msra.mxu0 0.0
      %1424 = vmatprep.subr.mxu0 0.0
      %1425 = vmatpush1.msra.mxu0 0.0
      %1426 = vmatprep.subr.mxu0 0.0
      %1427 = vmatpush1.msra.mxu0 0.0
      %1428 = vmatprep.subr.mxu0 0.0
      %1429 = vmatpush1.msra.mxu0 0.0
      %1430 = vmatprep.subr.mxu0 0.0
      %1431 = vmatpush1.msra.mxu0 0.0
      %1432 = vmatprep.subr.mxu0 0.0
      %1433 = vmatpush1.msra.mxu0 0.0
      %1434 = vmatprep.subr.mxu0 0.0
      %1435 = vmatpush1.msra.mxu0 0.0
      %1436 = vmatprep.subr.mxu0 0.0
      %1437 = vmatpush1.msra.mxu0 0.0
      %1438 = vmatprep.subr.mxu0 0.0
      %1439 = vmatpush1.msra.mxu0 0.0
      %1440 = vmatprep.subr.mxu0 0.0
      %1441 = vmatpush1.msra.mxu0 0.0
      %1442 = vmatprep.subr.mxu0 0.0
      %1443 = vmatpush1.msra.mxu0 0.0
      %1444 = vmatprep.subr.mxu0 0.0
      %1445 = vmatpush1.msra.mxu0 0.0
      %1446 = vmatprep.subr.mxu0 0.0
      %1447 = vmatpush1.msra.mxu0 0.0
      %1448 = vmatprep.subr.mxu0 0.0
      %1449 = vmatpush1.msra.mxu0 0.0
      %1450 = vmatprep.subr.mxu0 0.0
      %1451 = vmatpush1.msra.mxu0 0.0
      %1452 = vmatprep.subr.mxu0 0.0
      %1453 = vmatpush1.msra.mxu0 0.0
      %1454 = vmatprep.subr.mxu0 0.0
      %1455 = vmatpush1.msra.mxu0 0.0
      %1456 = vmatprep.subr.mxu0 0.0
      %1457 = vmatpush1.msra.mxu0 0.0
      %1458 = vmatprep.subr.mxu0 0.0
      %1459 = vmatpush1.msra.mxu0 0.0
      %1460 = vmatprep.subr.mxu0 0.0
      %1461 = vmatpush1.msra.mxu0 0.0
      %1462 = vmatprep.subr.mxu0 0.0
      %1463 = vmatpush1.msra.mxu0 0.0
      %1464 = vmatprep.subr.mxu0 0.0
      %1465 = vmatpush1.msra.mxu0 0.0
      %1466 = vmatprep.subr.mxu0 0.0
      %1467 = vmatpush1.msra.mxu0 0.0
      %1468 = vmatprep.mubr.f32.mxu0 0.0
      %1469 = vmatmul.mubr.f32.gmra.mrb[0].mxu0 %v1319
      %v1470 = vpop.f32.mrb[0].mxu0
      %v1471 = vadd.f32 %v1316, %v1470
      %v1472 = vpop.f32.mrb[0].mxu0
      %v1473 = vadd.f32 %v1316, %v1472
      %1474 = vdwg.mxu0
      %v1475 = vadd.f32 %v1400, %v522
      %v1476 = vadd.f32 %v1402, %v524
      %v1477 = vadd.f32 %v1471, %v593
      %v1478 = vadd.f32 %v1473, %v595
      %v1483 = vcombine.low %v1475, %v1476
      %v1484 = vcombine.low %v1477, %v1478
      %1487 = vst [vmem:[%s199] sm:$0xff] %v1483
      %1488 = vst [vmem:[%s199 + $0x8] sm:$0xff] %v1484
      %s1489 = smul.u32 4, %s15
      %p1490 = scmp.lt.s32.totalorder %s1489, 7
      %s1491 = scalar_select %p1490, %s1489, 7
      %s1492 = smul.addr %s1491, 4
      %s1493 = scalar_lea.vmem %s4, %s1492
      // Predicated region
      $region37: #{decoding_module_forward.1} parent=35 // pred_check
        %p1494 = pneg %p122
      $region38: #{decoding_module_forward.1} parent=35 // pred_check_branch
        %1496 = sbr.rel (%p1494) target = $region40
      $region39: #{decoding_module_forward.1} parent=35 // pred_region
        %s1497 = smul.u32 4, %s15
      $region40: #{decoding_module_forward.1} parent=35 // pred_fallthru
        _
    $region36: #{decoding_module_forward.1} parent=5 // pred_fallthru
      _
    %p1498 = scmp.le.s32.totalorder 2, %s10
    // Predicated region
    $region41: #{decoding_module_forward.1} parent=5 // pred_check
      %p1499 = pneg %p1498
    $region42: #{decoding_module_forward.1} parent=5 // pred_check_branch
      %1501 = sbr.rel (%p1499) target = $region44
    $region43: #{decoding_module_forward.1} parent=5 // pred_region
      %s1502 = ssub.s32 %s10, 2
      // Predicated region
      $region45: #{decoding_module_forward.1} parent=43 // pred_check
        %p1503 = pneg %p128
      $region46: #{decoding_module_forward.1} parent=43 // pred_check_branch
        %1505 = sbr.rel (%p1503) target = $region48
      $region47: #{decoding_module_forward.1} parent=43 // pred_region
        %s1506 = smul.u32 4, %s16
        %p1507 = scmp.lt.s32.totalorder %s1506, 7
        %s1508 = scalar_select %p1507, %s1506, 7
        %s1509 = smul.addr %s1508, 4
        %s1510 = scalar_lea.vmem %s4, %s1509
      $region48: #{decoding_module_forward.1} parent=43 // pred_fallthru
        _
    $region44: #{decoding_module_forward.1} parent=5 // pred_fallthru
      _
  $region6: #{decoding_module_forward.1} parent=0 // loop_footer
    %s14 = sadd.s32 1, %s10
  $region7: #{decoding_module_forward.1} parent=0 // loop_footer_branch
    %9 = sbr.rel target = $region3
  $region8: #{decoding_module_forward.1} parent=0 // loop_exit
    _

</llo_original>
